<compile_context>
chip_gen: v7x
topology: tpu7x:2x2x1
jax: 0.10.0
libtpu: 0.0.40
codegen_flags: <defaults>
</compile_context>

<pallas_src>
import functools

import jax
import jax.numpy as jnp
import numpy as np
from jax.experimental import pallas as pl
from jax.experimental.pallas import tpu as pltpu


# ----------------------------------------------------------------------------
# Kernel
# ----------------------------------------------------------------------------
def audio_crnn_kernel(G, CPAD,
                      x_ref, w1_ref, w2_ref, wg0_ref, wg1_ref, wc_ref,
                      vec_ref, o_ref):
    f32 = jnp.float32
    bf16 = jnp.bfloat16

    # Packed small-vector buffer (all f32), 128-aligned static offsets:
    #   [0:256)  s1   [256:512) t1   [512:640) s2   [640:768) t2
    #   [768 + i*G : 768 + (i+1)*G)  GRU biases, i = 0..7
    #     layer0: b_r, b_z, b_in, b_hn ; layer1: b_r, b_z, b_in, b_hn
    #   [768 + 8G : 768 + 8G + CPAD)  classifier bias (zero-padded)
    s1 = vec_ref[:, 0:256]
    t1 = vec_ref[:, 256:512]
    s2 = vec_ref[:, 512:640]
    t2 = vec_ref[:, 640:768]

    def gru_bias(i):
        start = 768 + i * G
        return vec_ref[:, start:start + G]

    bc = vec_ref[:, 768 + 8 * G: 768 + 8 * G + CPAD]

    # "cnn": Linear -> folded BN (scale/shift) -> ReLU -> Dropout(identity), x2.
    # Activations cast to bf16 only at the MXU inputs; accumulation is f32.
    h1 = jnp.maximum(
        jnp.dot(x_ref[...], w1_ref[...], preferred_element_type=f32)
        * s1 + t1, 0.0)
    feat = jnp.maximum(
        jnp.dot(h1.astype(bf16), w2_ref[...], preferred_element_type=f32)
        * s2 + t2, 0.0)

    def bi_gru_h0(inp, wg_ref, b_idx):
        # Fused bidirectional GRU step with h_prev = 0 (seq_len == 1).
        # Gate columns laid out [r_f|r_b|pad, z_f|z_b|pad, n_f|n_b|pad]
        # (each group G lanes, 128-aligned), so (1 - z) * n is directly the
        # concat([h_fwd, h_bwd]) output; padded lanes come out exactly 0.
        g = jnp.dot(inp.astype(bf16), wg_ref[...], preferred_element_type=f32)
        r = jax.nn.sigmoid(g[:, 0:G] + gru_bias(b_idx + 0))
        z = jax.nn.sigmoid(g[:, G:2 * G] + gru_bias(b_idx + 1))
        n = jnp.tanh(g[:, 2 * G:3 * G] + gru_bias(b_idx + 2)
                     + r * gru_bias(b_idx + 3))
        return (1.0 - z) * n

    out0 = bi_gru_h0(feat, wg0_ref, 0)   # GRU layer 0 (both directions)
    out1 = bi_gru_h0(out0, wg1_ref, 4)   # GRU layer 1 (inter-layer dropout = id)

    # Classifier on the only timestep; lane-dense (CPAD = 128) store.
    o_ref[...] = (jnp.dot(out1.astype(bf16), wc_ref[...],
                          preferred_element_type=f32) + bc)


# ----------------------------------------------------------------------------
# Wrapper
# ----------------------------------------------------------------------------
def audio_crnn_forward(x, params, hidden_dim, num_classes, tile_m=128):
    del hidden_dim  # shape info is carried by the prepared params
    B, D = x.shape
    G, CPAD = params["G"], params["CPAD"]

    # Batch tiling: >=128 rows per program when the batch allows; pad otherwise.
    tm = tile_m if B >= tile_m else max(8, -(-B // 8) * 8)
    pB = -(-B // tm) * tm
    xp = x if pB == B else jnp.pad(x, ((0, pB - B), (0, 0)))
    xp = xp.astype(jnp.bfloat16)

    def weight_spec(arr):
        # Full-array block, constant index_map -> stays resident across the grid.
        return pl.BlockSpec(arr.shape, lambda i: (0, 0))

    out = pl.pallas_call(
        functools.partial(audio_crnn_kernel, G, CPAD),
        out_shape=jax.ShapeDtypeStruct((pB, CPAD), jnp.float32),
        grid=(pB // tm,),
        in_specs=[
            pl.BlockSpec((tm, D), lambda i: (i, 0)),
            weight_spec(params["w1t"]),
            weight_spec(params["w2t"]),
            weight_spec(params["wg0"]),
            weight_spec(params["wg1"]),
            weight_spec(params["wc"]),
            weight_spec(params["vec"]),
        ],
        out_specs=pl.BlockSpec((tm, CPAD), lambda i: (i, 0)),
        compiler_params=pltpu.CompilerParams(
            dimension_semantics=("parallel",)),
    )(xp, params["w1t"], params["w2t"], params["wg0"], params["wg1"],
      params["wc"], params["vec"])

    return out[:B, :num_classes]


# ----------------------------------------------------------------------------
# Parameter prep: fold BN, fuse bidirectional GRU directions, pad, cast to bf16
# ----------------------------------------------------------------------------
def prepare_params(raw, input_dim, hidden_dim, num_classes):
    del input_dim
    H = hidden_dim
    G = -(-2 * H // 128) * 128                       # padded 2H (lane-aligned)
    CPAD = max(128, -(-num_classes // 128) * 128)    # padded classifier width
    eps = 1e-5
    bf16 = jnp.bfloat16

    # Fold BatchNorm1d (running stats) into scale/shift after the linear matmul:
    #   BN(xW^T + b) = (xW^T) * s + t,  s = g/sqrt(v+eps),  t = (b - m)*s + beta
    s1 = raw["bn1_g"] / jnp.sqrt(raw["bn1_v"] + eps)
    t1 = (raw["fc1_b"] - raw["bn1_m"]) * s1 + raw["bn1_b"]
    s2 = raw["bn2_g"] / jnp.sqrt(raw["bn2_v"] + eps)
    t2 = (raw["fc2_b"] - raw["bn2_m"]) * s2 + raw["bn2_b"]

    def fuse_dir_weights(w_f, w_b, in_real, in_pad):
        # PyTorch weight_ih_l*: (3H, in), gate rows ordered (r, z, n).
        # Build (in_pad, 3G): columns [g*G : g*G+H] = fwd, [g*G+H : g*G+2H] = bwd.
        wg = np.zeros((in_pad, 3 * G), np.float32)
        wf = np.asarray(w_f, np.float32)
        wb = np.asarray(w_b, np.float32)
        for gate in range(3):
            wg[:in_real, gate * G:gate * G + H] = wf[gate * H:(gate + 1) * H].T
            wg[:in_real, gate * G + H:gate * G + 2 * H] = \
                wb[gate * H:(gate + 1) * H].T
        return jnp.asarray(wg, bf16)

    def fuse_dir_bias(b_f, b_b, gate):
        v = np.zeros((G,), np.float32)
        v[:H] = np.asarray(b_f, np.float32)[gate * H:(gate + 1) * H]
        v[H:2 * H] = np.asarray(b_b, np.float32)[gate * H:(gate + 1) * H]
        return v

    def layer_biases(layer):
        bi_f = raw[f"gru_b_ih_l{layer}"]
        bh_f = raw[f"gru_b_hh_l{layer}"]
        bi_b = raw[f"gru_b_ih_l{layer}r"]
        bh_b = raw[f"gru_b_hh_l{layer}r"]
        b_r = fuse_dir_bias(bi_f, bi_b, 0) + fuse_dir_bias(bh_f, bh_b, 0)
        b_z = fuse_dir_bias(bi_f, bi_b, 1) + fuse_dir_bias(bh_f, bh_b, 1)
        b_in = fuse_dir_bias(bi_f, bi_b, 2)
        b_hn = fuse_dir_bias(bh_f, bh_b, 2)
        return [b_r, b_z, b_in, b_hn]

    # Classifier, zero-padded to a lane-dense (G, CPAD) block.
    wc = np.zeros((G, CPAD), np.float32)
    wc[:2 * H, :num_classes] = np.asarray(raw["fc_c_w"], np.float32).T
    bc = np.zeros((CPAD,), np.float32)
    bc[:num_classes] = np.asarray(raw["fc_c_b"], np.float32)

    vec = np.concatenate(
        [np.asarray(s1, np.float32), np.asarray(t1, np.float32),
         np.asarray(s2, np.float32), np.asarray(t2, np.float32)]
        + layer_biases(0) + layer_biases(1) + [bc]).reshape(1, -1)

    return {
        "G": G, "CPAD": CPAD,
        "w1t": jnp.asarray(raw["fc1_w"]).T.astype(bf16),
        "w2t": jnp.asarray(raw["fc2_w"]).T.astype(bf16),
        "wg0": fuse_dir_weights(raw["gru_w_ih_l0"], raw["gru_w_ih_l0r"],
                                128, 128),
        "wg1": fuse_dir_weights(raw["gru_w_ih_l1"], raw["gru_w_ih_l1r"],
                                2 * H, G),
        "wc": jnp.asarray(wc, bf16),
        "vec": jnp.asarray(vec, jnp.float32),
    }


# ----------------------------------------------------------------------------
# Synthetic "PyTorch-shaped" parameters and references
# ----------------------------------------------------------------------------
def init_raw_params(key, input_dim, hidden_dim, num_classes):
    H = hidden_dim
    ks = iter(jax.random.split(key, 40))

    def mat(shape, scale=0.1):
        # Round matmul weights through bf16 so the kernel's bf16 weight cast is
        # lossless relative to the f32 reference.
        v = scale * jax.random.normal(next(ks), shape)
        return v.astype(jnp.bfloat16).astype(jnp.float32)

    def vec_(shape, scale=0.1):
        return (scale * jax.random.normal(next(ks), shape)).astype(jnp.float32)

    raw = {}
    raw["fc1_w"] = mat((256, input_dim)); raw["fc1_b"] = vec_((256,))
    raw["bn1_g"] = 1.0 + vec_((256,));    raw["bn1_b"] = vec_((256,))
    raw["bn1_m"] = vec_((256,))
    raw["bn1_v"] = jnp.abs(vec_((256,), 0.5)) + 0.5

    raw["fc2_w"] = mat((128, 256));       raw["fc2_b"] = vec_((128,))
    raw["bn2_g"] = 1.0 + vec_((128,));    raw["bn2_b"] = vec_((128,))
    raw["bn2_m"] = vec_((128,))
    raw["bn2_v"] = jnp.abs(vec_((128,), 0.5)) + 0.5

    # GRU: 2 layers, bidirectional.  weight_hh_l* multiplies h0 == 0 and is
    # therefore omitted from both kernel and reference; bias_hh_l* is kept
    # (it enters through the r-gated n term).
    dims = {"l0": 128, "l0r": 128, "l1": 2 * H, "l1r": 2 * H}
    for name, in_dim in dims.items():
        raw[f"gru_w_ih_{name}"] = mat((3 * H, in_dim))
        raw[f"gru_b_ih_{name}"] = vec_((3 * H,))
        raw[f"gru_b_hh_{name}"] = vec_((3 * H,))

    raw["fc_c_w"] = mat((num_classes, 2 * H))
    raw["fc_c_b"] = vec_((num_classes,))
    return raw


def reference_forward(x, raw, hidden_dim):
    """Pure-JAX f32 reference with PyTorch eval() semantics (unfused)."""
    H = hidden_dim
    eps = 1e-5

    def bn(y, g, b, m, v):
        return (y - m) / jnp.sqrt(v + eps) * g + b

    h1 = jax.nn.relu(bn(x @ raw["fc1_w"].T + raw["fc1_b"],
                        raw["bn1_g"], raw["bn1_b"], raw["bn1_m"], raw["bn1_v"]))
    feat = jax.nn.relu(bn(h1 @ raw["fc2_w"].T + raw["fc2_b"],
                          raw["bn2_g"], raw["bn2_b"], raw["bn2_m"], raw["bn2_v"]))

    def cell(inp, w_ih, b_ih, b_hh):
        # PyTorch GRU cell with h_prev = 0, gate order (r, z, n).
        g = inp @ w_ih.T + b_ih
        r = jax.nn.sigmoid(g[:, :H] + b_hh[:H])
        z = jax.nn.sigmoid(g[:, H:2 * H] + b_hh[H:2 * H])
        n = jnp.tanh(g[:, 2 * H:] + r * b_hh[2 * H:])
        return (1.0 - z) * n

    def bi(inp, layer):
        hf = cell(inp, raw[f"gru_w_ih_l{layer}"], raw[f"gru_b_ih_l{layer}"],
                  raw[f"gru_b_hh_l{layer}"])
        hb = cell(inp, raw[f"gru_w_ih_l{layer}r"], raw[f"gru_b_ih_l{layer}r"],
                  raw[f"gru_b_hh_l{layer}r"])
        return jnp.concatenate([hf, hb], axis=-1)

    out1 = bi(bi(feat, 0), 1)
    return out1 @ raw["fc_c_w"].T + raw["fc_c_b"]


def reference_fused(x, params):
    """Pure-JAX mirror of the exact kernel math (bf16 matmuls, f32 accum)."""
    G, CPAD = params["G"], params["CPAD"]
    bf16, f32 = jnp.bfloat16, jnp.float32
    vec = params["vec"]
    s1, t1 = vec[:, 0:256], vec[:, 256:512]
    s2, t2 = vec[:, 512:640], vec[:, 640:768]
    b = lambda i: vec[:, 768 + i * G: 768 + (i + 1) * G]
    bc = vec[:, 768 + 8 * G: 768 + 8 * G + CPAD]

    h1 = jnp.maximum(jnp.dot(x.astype(bf16), params["w1t"],
                             preferred_element_type=f32) * s1 + t1, 0.0)
    feat = jnp.maximum(jnp.dot(h1.astype(bf16), params["w2t"],
                               preferred_element_type=f32) * s2 + t2, 0.0)

    def bi(inp, wg, k):
        g = jnp.dot(inp.astype(bf16), wg, preferred_element_type=f32)
        r = jax.nn.sigmoid(g[:, 0:G] + b(k))
        z = jax.nn.sigmoid(g[:, G:2 * G] + b(k + 1))
        n = jnp.tanh(g[:, 2 * G:3 * G] + b(k + 2) + r * b(k + 3))
        return (1.0 - z) * n

    out1 = bi(bi(feat, params["wg0"], 0), params["wg1"], 4)
    return jnp.dot(out1.astype(bf16), params["wc"],
                   preferred_element_type=f32) + bc


# ----------------------------------------------------------------------------
if __name__ == "__main__":
    # Small, module-consistent shapes: MFCC-like features, default hidden_dim.
    batch, input_dim, hidden_dim, num_classes = 256, 40, 64, 1

    key = jax.random.PRNGKey(0)
    kx, kp = jax.random.split(key)
    x = jax.random.normal(kx, (batch, input_dim), dtype=jnp.float32)

    raw = init_raw_params(kp, input_dim, hidden_dim, num_classes)
    params = prepare_params(raw, input_dim, hidden_dim, num_classes)

    out = audio_crnn_forward(x, params, hidden_dim, num_classes)
    out = jax.block_until_ready(out)
    assert out.shape == (batch, num_classes)

    # Tight check against a pure-JAX mirror of the kernel math.
    ref_fused = reference_fused(x, params)[:, :num_classes]
    np.testing.assert_allclose(np.asarray(out), np.asarray(ref_fused),
                               rtol=2e-3, atol=2e-3)

    # Semantic check against the f32 PyTorch-style reference (bf16 matmul
    # inputs in the kernel -> loose tolerance).
    ref = reference_forward(x, raw, hidden_dim)
    np.testing.assert_allclose(np.asarray(out), np.asarray(ref),
                               rtol=6e-2, atol=6e-2)

    print("KERNEL_OK")
</pallas_src>

<mosaic_0001>
module attributes {stable_mosaic.version = 11 : i64} {
  func.func @audio_crnn_kernel(%arg0: i32, %arg1: memref<128x40xbf16, #tpu.memory_space<vmem>>, %arg2: memref<40x256xbf16, #tpu.memory_space<vmem>>, %arg3: memref<256x128xbf16, #tpu.memory_space<vmem>>, %arg4: memref<128x384xbf16, #tpu.memory_space<vmem>>, %arg5: memref<128x384xbf16, #tpu.memory_space<vmem>>, %arg6: memref<128x128xbf16, #tpu.memory_space<vmem>>, %arg7: memref<1x1920xf32, #tpu.memory_space<vmem>>, %arg8: memref<128x128xf32, #tpu.memory_space<vmem>>) attributes {dimension_semantics = [#tpu.dimension_semantics<parallel>], iteration_bounds = array<i64: 2>, scalar_prefetch = 0 : i64, scratch_operands = 0 : i64, tpu.core_type = #tpu.core_type<tc>, window_params = [{transform_indices = @transform_0, window_bounds = array<i64: 128, 40>}, {pipeline_mode = #tpu.pipeline_mode<synchronous>, transform_indices = @transform_1, window_bounds = array<i64: 40, 256>}, {pipeline_mode = #tpu.pipeline_mode<synchronous>, transform_indices = @transform_2, window_bounds = array<i64: 256, 128>}, {pipeline_mode = #tpu.pipeline_mode<synchronous>, transform_indices = @transform_3, window_bounds = array<i64: 128, 384>}, {pipeline_mode = #tpu.pipeline_mode<synchronous>, transform_indices = @transform_4, window_bounds = array<i64: 128, 384>}, {pipeline_mode = #tpu.pipeline_mode<synchronous>, transform_indices = @transform_5, window_bounds = array<i64: 128, 128>}, {pipeline_mode = #tpu.pipeline_mode<synchronous>, transform_indices = @transform_6, window_bounds = array<i64: 1, 1920>}, {transform_indices = @transform_7, window_bounds = array<i64: 128, 128>}]} {
    %c0 = arith.constant 0 : index
    %c0_0 = arith.constant 0 : index
    %0 = vector.load %arg7[%c0, %c0_0] : memref<1x1920xf32, #tpu.memory_space<vmem>>, vector<1x256xf32>
    %c0_1 = arith.constant 0 : index
    %c256 = arith.constant 256 : index
    %1 = vector.load %arg7[%c0_1, %c256] : memref<1x1920xf32, #tpu.memory_space<vmem>>, vector<1x256xf32>
    %c0_2 = arith.constant 0 : index
    %c512 = arith.constant 512 : index
    %2 = vector.load %arg7[%c0_2, %c512] : memref<1x1920xf32, #tpu.memory_space<vmem>>, vector<1x128xf32>
    %c0_3 = arith.constant 0 : index
    %c640 = arith.constant 640 : index
    %3 = vector.load %arg7[%c0_3, %c640] : memref<1x1920xf32, #tpu.memory_space<vmem>>, vector<1x128xf32>
    %c0_4 = arith.constant 0 : index
    %c1792 = arith.constant 1792 : index
    %4 = vector.load %arg7[%c0_4, %c1792] : memref<1x1920xf32, #tpu.memory_space<vmem>>, vector<1x128xf32>
    %c0_5 = arith.constant 0 : index
    %c0_6 = arith.constant 0 : index
    %5 = vector.load %arg1[%c0_5, %c0_6] : memref<128x40xbf16, #tpu.memory_space<vmem>>, vector<128x40xbf16>
    %c0_7 = arith.constant 0 : index
    %c0_8 = arith.constant 0 : index
    %6 = vector.load %arg2[%c0_7, %c0_8] : memref<40x256xbf16, #tpu.memory_space<vmem>>, vector<40x256xbf16>
    %cst = arith.constant dense<0.000000e+00> : vector<128x256xf32>
    %7 = tpu.matmul %5, %6, %cst {dimension_numbers = #tpu.dot_dimension_numbers<[1], [0], [0], [1], [0, 0, 1, 1], [], []>} : vector<128x40xbf16>, vector<40x256xbf16>, vector<128x256xf32> -> vector<128x256xf32>
    %8 = vector.broadcast %0 : vector<1x256xf32> to vector<128x256xf32>
    %9 = arith.mulf %7, %8 : vector<128x256xf32>
    %10 = vector.broadcast %1 : vector<1x256xf32> to vector<128x256xf32>
    %11 = arith.addf %9, %10 : vector<128x256xf32>
    %cst_9 = arith.constant 0.000000e+00 : f32
    %12 = vector.broadcast %cst_9 : f32 to vector<128x256xf32>
    %13 = arith.maximumf %11, %12 : vector<128x256xf32>
    %14 = arith.truncf %13 : vector<128x256xf32> to vector<128x256xbf16>
    %c0_10 = arith.constant 0 : index
    %c0_11 = arith.constant 0 : index
    %15 = vector.load %arg3[%c0_10, %c0_11] : memref<256x128xbf16, #tpu.memory_space<vmem>>, vector<256x128xbf16>
    %cst_12 = arith.constant dense<0.000000e+00> : vector<128x128xf32>
    %16 = tpu.matmul %14, %15, %cst_12 {dimension_numbers = #tpu.dot_dimension_numbers<[1], [0], [0], [1], [0, 0, 1, 1], [], []>} : vector<128x256xbf16>, vector<256x128xbf16>, vector<128x128xf32> -> vector<128x128xf32>
    %17 = vector.broadcast %2 : vector<1x128xf32> to vector<128x128xf32>
    %18 = arith.mulf %16, %17 : vector<128x128xf32>
    %19 = vector.broadcast %3 : vector<1x128xf32> to vector<128x128xf32>
    %20 = arith.addf %18, %19 : vector<128x128xf32>
    %cst_13 = arith.constant 0.000000e+00 : f32
    %21 = vector.broadcast %cst_13 : f32 to vector<128x128xf32>
    %22 = arith.maximumf %20, %21 : vector<128x128xf32>
    %23 = arith.truncf %22 : vector<128x128xf32> to vector<128x128xbf16>
    %c0_14 = arith.constant 0 : index
    %c0_15 = arith.constant 0 : index
    %24 = vector.load %arg4[%c0_14, %c0_15] : memref<128x384xbf16, #tpu.memory_space<vmem>>, vector<128x384xbf16>
    %cst_16 = arith.constant dense<0.000000e+00> : vector<128x384xf32>
    %25 = tpu.matmul %23, %24, %cst_16 {dimension_numbers = #tpu.dot_dimension_numbers<[1], [0], [0], [1], [0, 0, 1, 1], [], []>} : vector<128x128xbf16>, vector<128x384xbf16>, vector<128x384xf32> -> vector<128x384xf32>
    %26 = vector.extract_strided_slice %25 {offsets = [0, 0], sizes = [128, 128], strides = [1, 1]} : vector<128x384xf32> to vector<128x128xf32>
    %c0_17 = arith.constant 0 : index
    %c768 = arith.constant 768 : index
    %27 = vector.load %arg7[%c0_17, %c768] : memref<1x1920xf32, #tpu.memory_space<vmem>>, vector<1x128xf32>
    %28 = vector.broadcast %27 : vector<1x128xf32> to vector<128x128xf32>
    %29 = arith.addf %26, %28 : vector<128x128xf32>
    %30 = arith.negf %29 : vector<128x128xf32>
    %31 = math.exp %30 : vector<128x128xf32>
    %cst_18 = arith.constant 1.000000e+00 : f32
    %32 = vector.broadcast %cst_18 : f32 to vector<128x128xf32>
    %33 = arith.addf %32, %31 : vector<128x128xf32>
    %34 = arith.divf %32, %33 : vector<128x128xf32>
    %35 = vector.extract_strided_slice %25 {offsets = [0, 128], sizes = [128, 128], strides = [1, 1]} : vector<128x384xf32> to vector<128x128xf32>
    %c0_19 = arith.constant 0 : index
    %c896 = arith.constant 896 : index
    %36 = vector.load %arg7[%c0_19, %c896] : memref<1x1920xf32, #tpu.memory_space<vmem>>, vector<1x128xf32>
    %37 = vector.broadcast %36 : vector<1x128xf32> to vector<128x128xf32>
    %38 = arith.addf %35, %37 : vector<128x128xf32>
    %39 = arith.negf %38 : vector<128x128xf32>
    %40 = math.exp %39 : vector<128x128xf32>
    %cst_20 = arith.constant 1.000000e+00 : f32
    %41 = vector.broadcast %cst_20 : f32 to vector<128x128xf32>
    %42 = arith.addf %41, %40 : vector<128x128xf32>
    %43 = arith.divf %41, %42 : vector<128x128xf32>
    %44 = vector.extract_strided_slice %25 {offsets = [0, 256], sizes = [128, 128], strides = [1, 1]} : vector<128x384xf32> to vector<128x128xf32>
    %c0_21 = arith.constant 0 : index
    %c1024 = arith.constant 1024 : index
    %45 = vector.load %arg7[%c0_21, %c1024] : memref<1x1920xf32, #tpu.memory_space<vmem>>, vector<1x128xf32>
    %46 = vector.broadcast %45 : vector<1x128xf32> to vector<128x128xf32>
    %47 = arith.addf %44, %46 : vector<128x128xf32>
    %c0_22 = arith.constant 0 : index
    %c1152 = arith.constant 1152 : index
    %48 = vector.load %arg7[%c0_22, %c1152] : memref<1x1920xf32, #tpu.memory_space<vmem>>, vector<1x128xf32>
    %49 = vector.broadcast %48 : vector<1x128xf32> to vector<128x128xf32>
    %50 = arith.mulf %34, %49 : vector<128x128xf32>
    %51 = arith.addf %47, %50 : vector<128x128xf32>
    %52 = math.tanh %51 : vector<128x128xf32>
    %cst_23 = arith.constant 1.000000e+00 : f32
    %53 = vector.broadcast %cst_23 : f32 to vector<128x128xf32>
    %54 = arith.subf %53, %43 : vector<128x128xf32>
    %55 = arith.mulf %54, %52 : vector<128x128xf32>
    %56 = arith.truncf %55 : vector<128x128xf32> to vector<128x128xbf16>
    %c0_24 = arith.constant 0 : index
    %c0_25 = arith.constant 0 : index
    %57 = vector.load %arg5[%c0_24, %c0_25] : memref<128x384xbf16, #tpu.memory_space<vmem>>, vector<128x384xbf16>
    %cst_26 = arith.constant dense<0.000000e+00> : vector<128x384xf32>
    %58 = tpu.matmul %56, %57, %cst_26 {dimension_numbers = #tpu.dot_dimension_numbers<[1], [0], [0], [1], [0, 0, 1, 1], [], []>} : vector<128x128xbf16>, vector<128x384xbf16>, vector<128x384xf32> -> vector<128x384xf32>
    %59 = vector.extract_strided_slice %58 {offsets = [0, 0], sizes = [128, 128], strides = [1, 1]} : vector<128x384xf32> to vector<128x128xf32>
    %c0_27 = arith.constant 0 : index
    %c1280 = arith.constant 1280 : index
    %60 = vector.load %arg7[%c0_27, %c1280] : memref<1x1920xf32, #tpu.memory_space<vmem>>, vector<1x128xf32>
    %61 = vector.broadcast %60 : vector<1x128xf32> to vector<128x128xf32>
    %62 = arith.addf %59, %61 : vector<128x128xf32>
    %63 = arith.negf %62 : vector<128x128xf32>
    %64 = math.exp %63 : vector<128x128xf32>
    %cst_28 = arith.constant 1.000000e+00 : f32
    %65 = vector.broadcast %cst_28 : f32 to vector<128x128xf32>
    %66 = arith.addf %65, %64 : vector<128x128xf32>
    %67 = arith.divf %65, %66 : vector<128x128xf32>
    %68 = vector.extract_strided_slice %58 {offsets = [0, 128], sizes = [128, 128], strides = [1, 1]} : vector<128x384xf32> to vector<128x128xf32>
    %c0_29 = arith.constant 0 : index
    %c1408 = arith.constant 1408 : index
    %69 = vector.load %arg7[%c0_29, %c1408] : memref<1x1920xf32, #tpu.memory_space<vmem>>, vector<1x128xf32>
    %70 = vector.broadcast %69 : vector<1x128xf32> to vector<128x128xf32>
    %71 = arith.addf %68, %70 : vector<128x128xf32>
    %72 = arith.negf %71 : vector<128x128xf32>
    %73 = math.exp %72 : vector<128x128xf32>
    %cst_30 = arith.constant 1.000000e+00 : f32
    %74 = vector.broadcast %cst_30 : f32 to vector<128x128xf32>
    %75 = arith.addf %74, %73 : vector<128x128xf32>
    %76 = arith.divf %74, %75 : vector<128x128xf32>
    %77 = vector.extract_strided_slice %58 {offsets = [0, 256], sizes = [128, 128], strides = [1, 1]} : vector<128x384xf32> to vector<128x128xf32>
    %c0_31 = arith.constant 0 : index
    %c1536 = arith.constant 1536 : index
    %78 = vector.load %arg7[%c0_31, %c1536] : memref<1x1920xf32, #tpu.memory_space<vmem>>, vector<1x128xf32>
    %79 = vector.broadcast %78 : vector<1x128xf32> to vector<128x128xf32>
    %80 = arith.addf %77, %79 : vector<128x128xf32>
    %c0_32 = arith.constant 0 : index
    %c1664 = arith.constant 1664 : index
    %81 = vector.load %arg7[%c0_32, %c1664] : memref<1x1920xf32, #tpu.memory_space<vmem>>, vector<1x128xf32>
    %82 = vector.broadcast %81 : vector<1x128xf32> to vector<128x128xf32>
    %83 = arith.mulf %67, %82 : vector<128x128xf32>
    %84 = arith.addf %80, %83 : vector<128x128xf32>
    %85 = math.tanh %84 : vector<128x128xf32>
    %cst_33 = arith.constant 1.000000e+00 : f32
    %86 = vector.broadcast %cst_33 : f32 to vector<128x128xf32>
    %87 = arith.subf %86, %76 : vector<128x128xf32>
    %88 = arith.mulf %87, %85 : vector<128x128xf32>
    %89 = arith.truncf %88 : vector<128x128xf32> to vector<128x128xbf16>
    %c0_34 = arith.constant 0 : index
    %c0_35 = arith.constant 0 : index
    %90 = vector.load %arg6[%c0_34, %c0_35] : memref<128x128xbf16, #tpu.memory_space<vmem>>, vector<128x128xbf16>
    %cst_36 = arith.constant dense<0.000000e+00> : vector<128x128xf32>
    %91 = tpu.matmul %89, %90, %cst_36 {dimension_numbers = #tpu.dot_dimension_numbers<[1], [0], [0], [1], [0, 0, 1, 1], [], []>} : vector<128x128xbf16>, vector<128x128xbf16>, vector<128x128xf32> -> vector<128x128xf32>
    %92 = vector.broadcast %4 : vector<1x128xf32> to vector<128x128xf32>
    %93 = arith.addf %91, %92 : vector<128x128xf32>
    %c0_37 = arith.constant 0 : index
    %c0_38 = arith.constant 0 : index
    %94 = vector.load %arg8[%c0_37, %c0_38] : memref<128x128xf32, #tpu.memory_space<vmem>>, vector<128x128xf32>
    tpu.vector_store %arg8[%c0_37, %c0_38], %93 {strides = array<i32>} : memref<128x128xf32, #tpu.memory_space<vmem>>, vector<128x128xf32>,
    return
  }
  func.func @transform_0(%arg0: i32) -> (i32, i32) {
    %c0_i32 = arith.constant 0 : i32
    %c0_i32_0 = arith.constant 0 : i32
    return %arg0, %c0_i32 : i32, i32
  }
  func.func @transform_1(%arg0: i32) -> (i32, i32) {
    %c0_i32 = arith.constant 0 : i32
    %c0_i32_0 = arith.constant 0 : i32
    %c0_i32_1 = arith.constant 0 : i32
    return %c0_i32, %c0_i32_0 : i32, i32
  }
  func.func @transform_2(%arg0: i32) -> (i32, i32) {
    %c0_i32 = arith.constant 0 : i32
    %c0_i32_0 = arith.constant 0 : i32
    %c0_i32_1 = arith.constant 0 : i32
    return %c0_i32, %c0_i32_0 : i32, i32
  }
  func.func @transform_3(%arg0: i32) -> (i32, i32) {
    %c0_i32 = arith.constant 0 : i32
    %c0_i32_0 = arith.constant 0 : i32
    %c0_i32_1 = arith.constant 0 : i32
    return %c0_i32, %c0_i32_0 : i32, i32
  }
  func.func @transform_4(%arg0: i32) -> (i32, i32) {
    %c0_i32 = arith.constant 0 : i32
    %c0_i32_0 = arith.constant 0 : i32
    %c0_i32_1 = arith.constant 0 : i32
    return %c0_i32, %c0_i32_0 : i32, i32
  }
  func.func @transform_5(%arg0: i32) -> (i32, i32) {
    %c0_i32 = arith.constant 0 : i32
    %c0_i32_0 = arith.constant 0 : i32
    %c0_i32_1 = arith.constant 0 : i32
    return %c0_i32, %c0_i32_0 : i32, i32
  }
  func.func @transform_6(%arg0: i32) -> (i32, i32) {
    %c0_i32 = arith.constant 0 : i32
    %c0_i32_0 = arith.constant 0 : i32
    %c0_i32_1 = arith.constant 0 : i32
    return %c0_i32, %c0_i32_0 : i32, i32
  }
  func.func @transform_7(%arg0: i32) -> (i32, i32) {
    %c0_i32 = arith.constant 0 : i32
    %c0_i32_0 = arith.constant 0 : i32
    return %arg0, %c0_i32 : i32, i32
  }
}

</mosaic_0001>

<llo_original>
// kernel: tpu_custom_call.1
$region0: #{tpu_custom_call.1}
  #allocation0 [shape = 'u32[]', space=smem, size = 0x4, offset = 0x4, fixed_abs, tag = 'smem constant byte address 0x4 - core index']
  #allocation1 [shape = 'u32[144,128]{1,0:T(1,128)}', space=vmem, size = 0x12000, scoped, tag = 'internal scratch']
  %s0 = inlined_call_operand.vmem [shape: bf16[256,40], index: 0, kind: input, shape index: {}]
  %s1 = inlined_call_operand.vmem [shape: bf16[40,256], index: 1, kind: input, shape index: {}]
  %s2 = inlined_call_operand.vmem [shape: bf16[256,128], index: 2, kind: input, shape index: {}]
  %s3 = inlined_call_operand.hbm [shape: bf16[128,384], index: 3, kind: input, shape index: {}]
  %s4 = inlined_call_operand.hbm [shape: bf16[128,384], index: 4, kind: input, shape index: {}]
  %s5 = inlined_call_operand.hbm [shape: bf16[128,128], index: 5, kind: input, shape index: {}]
  %s6 = inlined_call_operand.vmem [shape: f32[1,1920], index: 6, kind: input, shape index: {}]
  %s7 = inlined_call_operand.hbm [shape: f32[256,128], index: 7, kind: output, shape index: {}]
  %s8 = sld [smem:[#allocation0]]
  $region73: #{tpu_custom_call.1} parent=0
    _
  %s10 = ssub.s32 1, %s8
  %s11 = scalar_select 0, %s10, %s8
  $region1: #{tpu_custom_call.1} parent=0
    #allocation2 [shape = 'u8[98304]{0}', space=vmem, size = 0x18000, scoped, tag = 'input window, operand 3, single buffered']
    #allocation3 [shape = 's32[2]{0}', space=sflag, size = 0x8, scoped, tag = 'scoped memory for tpu_custom_call.1']
    #allocation4 [shape = 's32[2]{0}', space=sflag, size = 0x8, scoped, tag = 'scoped memory for tpu_custom_call.1']
    #allocation5 [shape = 'u8[98304]{0}', space=vmem, size = 0x18000, scoped, tag = 'input window, operand 4, single buffered']
    #allocation6 [shape = 's32[1]{0}', space=sflag, size = 0x4, scoped, tag = 'scoped memory for tpu_custom_call.1']
    #allocation7 [shape = 'u8[32768]{0}', space=vmem, size = 0x8000, scoped, tag = 'input window, operand 5, single buffered']
    #allocation8 [shape = 'u8[131072]{0}', space=vmem, size = 0x20000, scoped, tag = 'output window, operand 0']
    %12 = vsyncpa [#allocation3], 0
    %13 = vsyncpa [#allocation6], 0
    %14 = vsyncpa [#allocation4], 0
    %s15 = scalar_lea.sflag [#allocation4], 1
    %16 = vsyncpa %s15, 0
    loop: start=0, step=1, limit=4
    $region2: #{tpu_custom_call.1} parent=1 // loop_pre_header
      _
    $region3: #{tpu_custom_call.1} parent=1 // loop_header
      %s18 = sphi 0, %s22
      %p19 = scmp.ge.s32.totalorder %s18, 4
      %s28 = sphi 0, %s30
      %s31 = sphi 0, %s28
      %s32 = sphi 0, %s31
      %s48 = sphi 0, %s32
      %s52 = sphi 0, %s52
      %s54 = sphi 0, %s52
      %s55 = sphi 0, %s54
      %s69 = sphi 0, %s55
      %s73 = sphi 0, %s73
      %s75 = sphi 0, %s73
      %s76 = sphi 0, %s75
      %s90 = sphi 0, %s76
      %s94 = sphi 0, %s94
      %s96 = sphi 0, %s94
      %s97 = sphi 0, %s96
      %s111 = sphi 0, %s97
      %s115 = sphi 0, %s115
      %s117 = sphi 0, %s115
      %s118 = sphi 0, %s117
      %s132 = sphi 0, %s118
      %s136 = sphi 0, %s136
      %s138 = sphi 0, %s136
      %s139 = sphi 0, %s138
      %s153 = sphi 0, %s139
      %s157 = sphi 0, %s157
      %s159 = sphi 0, %s157
      %s160 = sphi 0, %s159
      %s174 = sphi 0, %s160
      %s180 = sphi 0, %s182
      %s183 = sphi 0, %s180
      %s184 = sphi 0, %s183
      %s200 = sphi 0, %s184
    $region4: #{tpu_custom_call.1} parent=1 // loop_header_branch
      %21 = sbr.rel (%p19) target = $region8
    $region5: #{tpu_custom_call.1} parent=1 // loop_body
      %s23 = ssub.s32 %s18, 1
      %s24 = ssub.s32 %s18, 2
      %s25 = sadd.s32 %s18, 1
      %s26 = ssub.s32 %s18, %s25
      %p27 = scmp.eq.s32.totalorder %s26, 0
      %s29 = sadd.s32 %s28, 1
      %s30 = scalar_select %p27, %s28, %s29
      %p33 = pneg %p27
      %p34 = scmp.eq.s32.totalorder %s18, 1
      %p35 = por %p33, %p34
      %p36 = scmp.ne.s32.totalorder %s28, %s31
      %p37 = scmp.eq.s32.totalorder %s18, 0
      %p38 = por %p36, %p37
      %p39 = scmp.ne.s32.totalorder %s28, %s31
      %p40 = scmp.eq.s32.totalorder %s23, 1
      %p41 = por %p39, %p40
      %p42 = scmp.ne.s32.totalorder %s31, %s32
      %p43 = scmp.eq.s32.totalorder %s23, 0
      %p44 = por %p42, %p43
      %p45 = scmp.ne.s32.totalorder %s31, %s32
      %p46 = scmp.eq.s32.totalorder %s24, 1
      %p47 = por %p45, %p46
      %p49 = scmp.ne.s32.totalorder %s32, %s48
      %p50 = scmp.eq.s32.totalorder %s24, 0
      %p51 = por %p49, %p50
      %s53 = sadd.s32 %s52, 1
      %p56 = scmp.eq.s32.totalorder %s18, 1
      %p57 = scmp.ne.s32.totalorder %s52, %s54
      %p58 = scmp.eq.s32.totalorder %s18, 0
      %p59 = por %p57, %p58
      %p60 = scmp.ne.s32.totalorder %s52, %s54
      %p61 = scmp.eq.s32.totalorder %s23, 1
      %p62 = por %p60, %p61
      %p63 = scmp.ne.s32.totalorder %s54, %s55
      %p64 = scmp.eq.s32.totalorder %s23, 0
      %p65 = por %p63, %p64
      %p66 = scmp.ne.s32.totalorder %s54, %s55
      %p67 = scmp.eq.s32.totalorder %s24, 1
      %p68 = por %p66, %p67
      %p70 = scmp.ne.s32.totalorder %s55, %s69
      %p71 = scmp.eq.s32.totalorder %s24, 0
      %p72 = por %p70, %p71
      %s74 = sadd.s32 %s73, 1
      %p77 = scmp.eq.s32.totalorder %s18, 1
      %p78 = scmp.ne.s32.totalorder %s73, %s75
      %p79 = scmp.eq.s32.totalorder %s18, 0
      %p80 = por %p78, %p79
      %p81 = scmp.ne.s32.totalorder %s73, %s75
      %p82 = scmp.eq.s32.totalorder %s23, 1
      %p83 = por %p81, %p82
      %p84 = scmp.ne.s32.totalorder %s75, %s76
      %p85 = scmp.eq.s32.totalorder %s23, 0
      %p86 = por %p84, %p85
      %p87 = scmp.ne.s32.totalorder %s75, %s76
      %p88 = scmp.eq.s32.totalorder %s24, 1
      %p89 = por %p87, %p88
      %p91 = scmp.ne.s32.totalorder %s76, %s90
      %p92 = scmp.eq.s32.totalorder %s24, 0
      %p93 = por %p91, %p92
      %s95 = sadd.s32 %s94, 1
      %p98 = scmp.eq.s32.totalorder %s18, 1
      %p99 = scmp.ne.s32.totalorder %s94, %s96
      %p100 = scmp.eq.s32.totalorder %s18, 0
      %p101 = por %p99, %p100
      %p102 = scmp.ne.s32.totalorder %s94, %s96
      %p103 = scmp.eq.s32.totalorder %s23, 1
      %p104 = por %p102, %p103
      %p105 = scmp.ne.s32.totalorder %s96, %s97
      %p106 = scmp.eq.s32.totalorder %s23, 0
      %p107 = por %p105, %p106
      %p108 = scmp.ne.s32.totalorder %s96, %s97
      %p109 = scmp.eq.s32.totalorder %s24, 1
      %p110 = por %p108, %p109
      %p112 = scmp.ne.s32.totalorder %s97, %s111
      %p113 = scmp.eq.s32.totalorder %s24, 0
      %p114 = por %p112, %p113
      %s116 = sadd.s32 %s115, 1
      %p119 = scmp.eq.s32.totalorder %s18, 1
      %p120 = scmp.ne.s32.totalorder %s115, %s117
      %p121 = scmp.eq.s32.totalorder %s18, 0
      %p122 = por %p120, %p121
      %p123 = scmp.ne.s32.totalorder %s115, %s117
      %p124 = scmp.eq.s32.totalorder %s23, 1
      %p125 = por %p123, %p124
      %p126 = scmp.ne.s32.totalorder %s117, %s118
      %p127 = scmp.eq.s32.totalorder %s23, 0
      %p128 = por %p126, %p127
      %p129 = scmp.ne.s32.totalorder %s117, %s118
      %p130 = scmp.eq.s32.totalorder %s24, 1
      %p131 = por %p129, %p130
      %p133 = scmp.ne.s32.totalorder %s118, %s132
      %p134 = scmp.eq.s32.totalorder %s24, 0
      %p135 = por %p133, %p134
      %s137 = sadd.s32 %s136, 1
      %p140 = scmp.eq.s32.totalorder %s18, 1
      %p141 = scmp.ne.s32.totalorder %s136, %s138
      %p142 = scmp.eq.s32.totalorder %s18, 0
      %p143 = por %p141, %p142
      %p144 = scmp.ne.s32.totalorder %s136, %s138
      %p145 = scmp.eq.s32.totalorder %s23, 1
      %p146 = por %p144, %p145
      %p147 = scmp.ne.s32.totalorder %s138, %s139
      %p148 = scmp.eq.s32.totalorder %s23, 0
      %p149 = por %p147, %p148
      %p150 = scmp.ne.s32.totalorder %s138, %s139
      %p151 = scmp.eq.s32.totalorder %s24, 1
      %p152 = por %p150, %p151
      %p154 = scmp.ne.s32.totalorder %s139, %s153
      %p155 = scmp.eq.s32.totalorder %s24, 0
      %p156 = por %p154, %p155
      %s158 = sadd.s32 %s157, 1
      %p161 = scmp.eq.s32.totalorder %s18, 1
      %p162 = scmp.ne.s32.totalorder %s157, %s159
      %p163 = scmp.eq.s32.totalorder %s18, 0
      %p164 = por %p162, %p163
      %p165 = scmp.ne.s32.totalorder %s157, %s159
      %p166 = scmp.eq.s32.totalorder %s23, 1
      %p167 = por %p165, %p166
      %p168 = scmp.ne.s32.totalorder %s159, %s160
      %p169 = scmp.eq.s32.totalorder %s23, 0
      %p170 = por %p168, %p169
      %p171 = scmp.ne.s32.totalorder %s159, %s160
      %p172 = scmp.eq.s32.totalorder %s24, 1
      %p173 = por %p171, %p172
      %p175 = scmp.ne.s32.totalorder %s160, %s174
      %p176 = scmp.eq.s32.totalorder %s24, 0
      %p177 = por %p175, %p176
      %s178 = ssub.s32 %s18, %s25
      %p179 = scmp.eq.s32.totalorder %s178, 0
      %s181 = sadd.s32 %s180, 1
      %s182 = scalar_select %p179, %s180, %s181
      %p185 = pneg %p179
      %p186 = scmp.eq.s32.totalorder %s18, 1
      %p187 = por %p185, %p186
      %p188 = scmp.ne.s32.totalorder %s180, %s183
      %p189 = scmp.eq.s32.totalorder %s18, 0
      %p190 = por %p188, %p189
      %p191 = scmp.ne.s32.totalorder %s180, %s183
      %p192 = scmp.eq.s32.totalorder %s23, 1
      %p193 = por %p191, %p192
      %p194 = scmp.ne.s32.totalorder %s183, %s184
      %p195 = scmp.eq.s32.totalorder %s23, 0
      %p196 = por %p194, %p195
      %p197 = scmp.ne.s32.totalorder %s183, %s184
      %p198 = scmp.eq.s32.totalorder %s24, 1
      %p199 = por %p197, %p198
      %p201 = scmp.ne.s32.totalorder %s184, %s200
      %p202 = scmp.eq.s32.totalorder %s24, 0
      %p203 = por %p201, %p202
      %p204 = scmp.le.s32.totalorder 1, %s18
      %p205 = scmp.lt.s32.totalorder %s18, 3
      %p206 = pnand %p204, %p205
      %p207 = pneg %p206
      // Predicated region
      $region9: #{tpu_custom_call.1} parent=5 // pred_check
        _
      $region10: #{tpu_custom_call.1} parent=5 // pred_check_branch
        %209 = sbr.rel (%p206) target = $region12
      $region11: #{tpu_custom_call.1} parent=5 // pred_region
        %s210 = ssub.s32 %s18, 1
        // Predicated region
        $region13: #{tpu_custom_call.1} parent=11 // pred_check
          %p211 = pneg %p65
        $region14: #{tpu_custom_call.1} parent=11 // pred_check_branch
          %213 = sbr.rel (%p211) target = $region16
        $region15: #{tpu_custom_call.1} parent=11 // pred_region
          _
        $region16: #{tpu_custom_call.1} parent=11 // pred_fallthru
          _
        // Predicated region
        $region17: #{tpu_custom_call.1} parent=11 // pred_check
          %p214 = pneg %p86
        $region18: #{tpu_custom_call.1} parent=11 // pred_check_branch
          %216 = sbr.rel (%p214) target = $region20
        $region19: #{tpu_custom_call.1} parent=11 // pred_region
          _
        $region20: #{tpu_custom_call.1} parent=11 // pred_fallthru
          _
        // Predicated region
        $region21: #{tpu_custom_call.1} parent=11 // pred_check
          %p217 = pneg %p107
        $region22: #{tpu_custom_call.1} parent=11 // pred_check_branch
          %219 = sbr.rel (%p217) target = $region24
        $region23: #{tpu_custom_call.1} parent=11 // pred_region
          %s221 = ssub.s32 3072, 3072
          %222 = vsyncadd [#allocation3], %s221
          %s223 = sshll.u32 [#allocation2], 4
          %s224 = int_to_ptr.vmem [resolvable:$true] %s223
          %229 = dma.hbm_to_vmem [thread:$0]  %s3, 3072, %s224, [#allocation3], 192, 192, 12
        $region24: #{tpu_custom_call.1} parent=11 // pred_fallthru
          _
        // Predicated region
        $region25: #{tpu_custom_call.1} parent=11 // pred_check
          %p230 = pneg %p128
        $region26: #{tpu_custom_call.1} parent=11 // pred_check_branch
          %232 = sbr.rel (%p230) target = $region28
        $region27: #{tpu_custom_call.1} parent=11 // pred_region
          %s234 = ssub.s32 3072, 3072
          %235 = vsyncadd [#allocation6], %s234
          %s236 = sshll.u32 [#allocation5], 4
          %s237 = int_to_ptr.vmem [resolvable:$true] %s236
          %242 = dma.hbm_to_vmem [thread:$0]  %s4, 3072, %s237, [#allocation6], 192, 192, 12
        $region28: #{tpu_custom_call.1} parent=11 // pred_fallthru
          _
        // Predicated region
        $region29: #{tpu_custom_call.1} parent=11 // pred_check
          %p243 = pneg %p149
        $region30: #{tpu_custom_call.1} parent=11 // pred_check_branch
          %245 = sbr.rel (%p243) target = $region32
        $region31: #{tpu_custom_call.1} parent=11 // pred_region
          %s247 = ssub.s32 1024, 1024
          %248 = vsyncadd [#allocation6], %s247
          %s249 = sshll.u32 [#allocation7], 4
          %s250 = int_to_ptr.vmem [resolvable:$true] %s249
          %255 = dma.hbm_to_vmem [thread:$0]  %s5, 1024, %s250, [#allocation6], 64, 64, 4
        $region32: #{tpu_custom_call.1} parent=11 // pred_fallthru
          _
        // Predicated region
        $region33: #{tpu_custom_call.1} parent=11 // pred_check
          %p256 = pneg %p170
        $region34: #{tpu_custom_call.1} parent=11 // pred_check_branch
          %258 = sbr.rel (%p256) target = $region36
        $region35: #{tpu_custom_call.1} parent=11 // pred_region
          _
        $region36: #{tpu_custom_call.1} parent=11 // pred_fallthru
          _
      $region12: #{tpu_custom_call.1} parent=5 // pred_fallthru
        _
      %p259 = scmp.lt.s32.totalorder %s18, 2
      // Predicated region
      $region37: #{tpu_custom_call.1} parent=5 // pred_check
        %p260 = pneg %p259
      $region38: #{tpu_custom_call.1} parent=5 // pred_check_branch
        %262 = sbr.rel (%p260) target = $region40
      $region39: #{tpu_custom_call.1} parent=5 // pred_region
        // Predicated region
        $region41: #{tpu_custom_call.1} parent=39 // pred_check
          %p263 = pneg %p38
        $region42: #{tpu_custom_call.1} parent=39 // pred_check_branch
          %265 = sbr.rel (%p263) target = $region44
        $region43: #{tpu_custom_call.1} parent=39 // pred_region
          %s266 = smul.u32 16, %s18
          %p267 = scmp.lt.s32.totalorder %s266, 31
          %s268 = scalar_select %p267, %s266, 31
          %s269 = smul.addr %s268, 4
          %s270 = scalar_lea.vmem %s0, %s269
          %s271 = smul.u32 16, %s18
        $region44: #{tpu_custom_call.1} parent=39 // pred_fallthru
          _
      $region40: #{tpu_custom_call.1} parent=5 // pred_fallthru
        _
      %p272 = scmp.le.s32.totalorder 1, %s18
      %p273 = scmp.lt.s32.totalorder %s18, 3
      %p274 = pnand %p272, %p273
      %p275 = pneg %p274
      // Predicated region
      $region45: #{tpu_custom_call.1} parent=5 // pred_check
        _
      $region46: #{tpu_custom_call.1} parent=5 // pred_check_branch
        %277 = sbr.rel (%p274) target = $region48
      $region47: #{tpu_custom_call.1} parent=5 // pred_region
        %s278 = ssub.s32 %s18, 1
        // Predicated region
        $region49: #{tpu_custom_call.1} parent=47 // pred_check
          %p279 = pneg %p107
        $region50: #{tpu_custom_call.1} parent=47 // pred_check_branch
          %281 = sbr.rel (%p279) target = $region52
        $region51: #{tpu_custom_call.1} parent=47 // pred_region
          %282 = dma.done [#allocation3], 3072
        $region52: #{tpu_custom_call.1} parent=47 // pred_fallthru
          _
        // Predicated region
        $region53: #{tpu_custom_call.1} parent=47 // pred_check
          %p283 = pneg %p128
        $region54: #{tpu_custom_call.1} parent=47 // pred_check_branch
          %285 = sbr.rel (%p283) target = $region56
        $region55: #{tpu_custom_call.1} parent=47 // pred_region
          %286 = dma.done [#allocation6], 3072
        $region56: #{tpu_custom_call.1} parent=47 // pred_fallthru
          _
        // Predicated region
        $region57: #{tpu_custom_call.1} parent=47 // pred_check
          %p287 = pneg %p149
        $region58: #{tpu_custom_call.1} parent=47 // pred_check_branch
          %289 = sbr.rel (%p287) target = $region60
        $region59: #{tpu_custom_call.1} parent=47 // pred_region
          %290 = dma.done [#allocation6], 1024
        $region60: #{tpu_custom_call.1} parent=47 // pred_fallthru
          _
        %s291 = smul.u32 16, %s23
        %p292 = scmp.lt.s32.totalorder %s291, 31
        %s293 = scalar_select %p292, %s291, 31
        %s294 = smul.addr %s293, 4
        %s295 = scalar_lea.vmem %s0, %s294
        %p296 = pneg %p44
        %p297 = pneg %p41
        %p298 = pneg %p65
        %p299 = pneg %p62
        %p300 = pneg %p86
        %p301 = pneg %p83
        %p302 = pneg %p107
        %p303 = pneg %p104
        %p304 = pneg %p128
        %p305 = pneg %p125
        %p306 = pneg %p149
        %p307 = pneg %p146
        %p308 = pneg %p170
        %p309 = pneg %p167
        %p310 = pneg %p196
        %p311 = pneg %p193
        %s312 = sand.u32 %s183, 1
        %s313 = scalar_lea.sflag [#allocation4], %s312
        %s314 = sand.u32 %s183, 1
        %s315 = smul.addr %s314, 128
        %s316 = scalar_lea.vmem [#allocation8], %s315
        %s317 = smul.u32 16, %s23
        %p318 = scmp.lt.s32.totalorder %s317, 31
        %s319 = scalar_select %p318, %s317, 31
        %s320 = smul.addr %s319, 4
        %s321 = scalar_lea.vmem %s0, %s320
        %s322 = smul.u32 16, %s23
        %s323 = smul.u32 16, %s23
        %v325 = vld [vmem:[%s6] sm:$0x3]
        %v326 = vld [vmem:[%s6 + $0x2] sm:$0x3]
        %v327 = vld [vmem:[%s6 + $0x4] sm:$0x1]
        %v328 = vld [vmem:[%s6 + $0x5] sm:$0x1]
        %v329 = vld [vmem:[%s6 + $0xe] sm:$0x1]
        %v330 = vld [vmem:[%s321] sm:$0xf]
        %v331 = vld [vmem:[%s321 + $0x4] sm:$0xf]
        %v332 = vld [vmem:[%s321 + $0x8] sm:$0xf]
        %v333 = vld [vmem:[%s321 + $0xc] sm:$0xf]
        %v334 = vld [vmem:[%s321 + $0x10] sm:$0xf]
        %v335 = vld [vmem:[%s321 + $0x14] sm:$0xf]
        %v336 = vld [vmem:[%s321 + $0x18] sm:$0xf]
        %v337 = vld [vmem:[%s321 + $0x1c] sm:$0xf]
        %v338 = vld [vmem:[%s321 + $0x20] sm:$0xf]
        %v339 = vld [vmem:[%s321 + $0x24] sm:$0xf]
        %v340 = vld [vmem:[%s321 + $0x28] sm:$0xf]
        %v341 = vld [vmem:[%s321 + $0x2c] sm:$0xf]
        %v342 = vld [vmem:[%s321 + $0x30] sm:$0xf]
        %v343 = vld [vmem:[%s321 + $0x34] sm:$0xf]
        %v344 = vld [vmem:[%s321 + $0x38] sm:$0xf]
        %v345 = vld [vmem:[%s321 + $0x3c] sm:$0xf]
        %v346 = vld [vmem:[%s1] sm:$0xff]
        %v347 = vld [vmem:[%s1 + $0x8] sm:$0xff]
        %v348 = vld [vmem:[%s1 + $0x10] sm:$0xff]
        %v349 = vld [vmem:[%s1 + $0x18] sm:$0xff]
        %v350 = vld [vmem:[%s1 + $0x20] sm:$0xff]
        %v367 = vunpack.c.l.b16 %v330
        %v368 = vunpack.c.l.b16 %v331
        %v369 = vunpack.c.l.b16 %v332
        %v370 = vunpack.c.l.b16 %v333
        %v371 = vunpack.c.l.b16 %v334
        %v372 = vunpack.c.l.b16 %v335
        %v373 = vunpack.c.l.b16 %v336
        %v374 = vunpack.c.l.b16 %v337
        %v375 = vunpack.c.l.b16 %v338
        %v376 = vunpack.c.l.b16 %v339
        %v377 = vunpack.c.l.b16 %v340
        %v378 = vunpack.c.l.b16 %v341
        %v379 = vunpack.c.l.b16 %v342
        %v380 = vunpack.c.l.b16 %v343
        %v381 = vunpack.c.l.b16 %v344
        %v382 = vunpack.c.l.b16 %v345
        %v383 = vpack.c.b16 %v368, %v367
        %v384 = vpack.c.b16 %v370, %v369
        %v385 = vpack.c.b16 %v372, %v371
        %v386 = vpack.c.b16 %v374, %v373
        %v387 = vpack.c.b16 %v376, %v375
        %v388 = vpack.c.b16 %v378, %v377
        %v389 = vpack.c.b16 %v380, %v379
        %v390 = vpack.c.b16 %v382, %v381
        %v396 = vunpack.c.l.b16 %v346
        %v397 = vunpack.c.h.b16 %v346
        %v398 = vunpack.c.l.b16 %v347
        %v399 = vunpack.c.h.b16 %v347
        %v400 = vunpack.c.l.b16 %v348
        %v401 = vunpack.c.h.b16 %v348
        %v402 = vunpack.c.l.b16 %v349
        %v403 = vunpack.c.h.b16 %v349
        %v404 = vunpack.c.l.b16 %v350
        %v405 = vunpack.c.h.b16 %v350
        %v406 = vpack.c.b16 %v398, %v396
        %v407 = vpack.c.b16 %v399, %v397
        %v408 = vpack.c.b16 %v402, %v400
        %v409 = vpack.c.b16 %v403, %v401
        %v410 = vpack.c.b16 %v404, %v404
        %v411 = vpack.c.b16 %v405, %v405
        %vm416 = vcmask 326656
        %v418 = vsel %vm416, %v383, 0
        %v421 = vsel %vm416, %v384, 0
        %v424 = vsel %vm416, %v385, 0
        %v427 = vsel %vm416, %v386, 0
        %v430 = vsel %vm416, %v387, 0
        %v433 = vsel %vm416, %v388, 0
        %v436 = vsel %vm416, %v389, 0
        %v439 = vsel %vm416, %v390, 0
        %vm441 = vcmask 1043456
        %v443 = vsel %vm441, %v410, 0
        %v446 = vsel %vm441, %v411, 0
        %448 = vmatprep.subr.bf16.mxu0 %v407
        %449 = vmatpush1.bf16.msra.mxu0 %v406
        %450 = vmatprep.subr.bf16.mxu0 %v409
        %451 = vmatpush1.bf16.msra.mxu0 %v408
        %452 = vmatprep.subr.bf16.mxu0 %v446
        %453 = vmatpush1.bf16.msra.mxu0 %v443
        %454 = vmatprep.subr.bf16.mxu0 0
        %455 = vmatpush1.bf16.msra.mxu0 0
        %456 = vmatprep.subr.bf16.mxu0 0
        %457 = vmatpush1.bf16.msra.mxu0 0
        %458 = vmatprep.subr.bf16.mxu0 0
        %459 = vmatpush1.bf16.msra.mxu0 0
        %460 = vmatprep.subr.bf16.mxu0 0
        %461 = vmatpush1.bf16.msra.mxu0 0
        %462 = vmatprep.subr.bf16.mxu0 0
        %463 = vmatpush1.bf16.msra.mxu0 0
        %464 = vmatprep.subr.bf16.mxu0 0
        %465 = vmatpush1.bf16.msra.mxu0 0
        %466 = vmatprep.subr.bf16.mxu0 0
        %467 = vmatpush1.bf16.msra.mxu0 0
        %468 = vmatprep.subr.bf16.mxu0 0
        %469 = vmatpush1.bf16.msra.mxu0 0
        %470 = vmatprep.subr.bf16.mxu0 0
        %471 = vmatpush1.bf16.msra.mxu0 0
        %472 = vmatprep.subr.bf16.mxu0 0
        %473 = vmatpush1.bf16.msra.mxu0 0
        %474 = vmatprep.subr.bf16.mxu0 0
        %475 = vmatpush1.bf16.msra.mxu0 0
        %476 = vmatprep.subr.bf16.mxu0 0
        %477 = vmatpush1.bf16.msra.mxu0 0
        %478 = vmatprep.subr.bf16.mxu0 0
        %479 = vmatpush1.bf16.msra.mxu0 0
        %480 = vmatprep.mubr.bf16.mxu0 0
        %481 = vmatmul.mubr.bf16.gmra.mrb[0].mxu0 %v418
        %v482 = vpop.f32.mrb[0].mxu0
        %v483 = vadd.f32 0.0, %v482
        %v484 = vpop.f32.mrb[0].mxu0
        %v485 = vadd.f32 0.0, %v484
        %v486 = vpop.f32.mrb[0].mxu0
        %v487 = vadd.f32 0.0, %v486
        %v488 = vpop.f32.mrb[0].mxu0
        %v489 = vadd.f32 0.0, %v488
        %490 = vmatprep.mubr.bf16.mxu0 0
        %491 = vmatmul.mubr.bf16.gmra.mrb[0].mxu0 %v421
        %v492 = vpop.f32.mrb[0].mxu0
        %v493 = vadd.f32 0.0, %v492
        %v494 = vpop.f32.mrb[0].mxu0
        %v495 = vadd.f32 0.0, %v494
        %v496 = vpop.f32.mrb[0].mxu0
        %v497 = vadd.f32 0.0, %v496
        %v498 = vpop.f32.mrb[0].mxu0
        %v499 = vadd.f32 0.0, %v498
        %500 = vmatprep.mubr.bf16.mxu0 0
        %501 = vmatmul.mubr.bf16.gmra.mrb[0].mxu0 %v424
        %v502 = vpop.f32.mrb[0].mxu0
        %v503 = vadd.f32 0.0, %v502
        %v504 = vpop.f32.mrb[0].mxu0
        %v505 = vadd.f32 0.0, %v504
        %v506 = vpop.f32.mrb[0].mxu0
        %v507 = vadd.f32 0.0, %v506
        %v508 = vpop.f32.mrb[0].mxu0
        %v509 = vadd.f32 0.0, %v508
        %510 = vmatprep.mubr.bf16.mxu0 0
        %511 = vmatmul.mubr.bf16.gmra.mrb[0].mxu0 %v427
        %v512 = vpop.f32.mrb[0].mxu0
        %v513 = vadd.f32 0.0, %v512
        %v514 = vpop.f32.mrb[0].mxu0
        %v515 = vadd.f32 0.0, %v514
        %v516 = vpop.f32.mrb[0].mxu0
        %v517 = vadd.f32 0.0, %v516
        %v518 = vpop.f32.mrb[0].mxu0
        %v519 = vadd.f32 0.0, %v518
        %520 = vmatprep.mubr.bf16.mxu0 0
        %521 = vmatmul.mubr.bf16.gmra.mrb[0].mxu0 %v430
        %v522 = vpop.f32.mrb[0].mxu0
        %v523 = vadd.f32 0.0, %v522
        %v524 = vpop.f32.mrb[0].mxu0
        %v525 = vadd.f32 0.0, %v524
        %v526 = vpop.f32.mrb[0].mxu0
        %v527 = vadd.f32 0.0, %v526
        %v528 = vpop.f32.mrb[0].mxu0
        %v529 = vadd.f32 0.0, %v528
        %530 = vmatprep.mubr.bf16.mxu0 0
        %531 = vmatmul.mubr.bf16.gmra.mrb[0].mxu0 %v433
        %v532 = vpop.f32.mrb[0].mxu0
        %v533 = vadd.f32 0.0, %v532
        %v534 = vpop.f32.mrb[0].mxu0
        %v535 = vadd.f32 0.0, %v534
        %v536 = vpop.f32.mrb[0].mxu0
        %v537 = vadd.f32 0.0, %v536
        %v538 = vpop.f32.mrb[0].mxu0
        %v539 = vadd.f32 0.0, %v538
        %540 = vmatprep.mubr.bf16.mxu0 0
        %541 = vmatmul.mubr.bf16.gmra.mrb[0].mxu0 %v436
        %v542 = vpop.f32.mrb[0].mxu0
        %v543 = vadd.f32 0.0, %v542
        %v544 = vpop.f32.mrb[0].mxu0
        %v545 = vadd.f32 0.0, %v544
        %v546 = vpop.f32.mrb[0].mxu0
        %v547 = vadd.f32 0.0, %v546
        %v548 = vpop.f32.mrb[0].mxu0
        %v549 = vadd.f32 0.0, %v548
        %550 = vmatprep.mubr.bf16.mxu0 0
        %551 = vmatmul.mubr.bf16.gmra.mrb[0].mxu0 %v439
        %v552 = vpop.f32.mrb[0].mxu0
        %v553 = vadd.f32 0.0, %v552
        %v554 = vpop.f32.mrb[0].mxu0
        %v555 = vadd.f32 0.0, %v554
        %v556 = vpop.f32.mrb[0].mxu0
        %v557 = vadd.f32 0.0, %v556
        %v558 = vpop.f32.mrb[0].mxu0
        %v559 = vadd.f32 0.0, %v558
        %560 = vdwg.mxu0
        %v562 = vlaneseq
        %v563 = vshrl.u32 %v562, 7
        %v564 = vsub.s32 0, %v563
        %v565 = vrot.slane %v325, %v564
        %v566 = vlaneseq
        %v567 = vshrl.u32 %v566, 7
        %v568 = vsub.s32 1, %v567
        %v569 = vrot.slane %v325, %v568
        %v572 = vmul.f32 %v483, %v565
        %v573 = vmul.f32 %v485, %v569
        %v574 = vmul.f32 %v487, %v565
        %v575 = vmul.f32 %v489, %v569
        %v576 = vmul.f32 %v493, %v565
        %v577 = vmul.f32 %v495, %v569
        %v578 = vmul.f32 %v497, %v565
        %v579 = vmul.f32 %v499, %v569
        %v580 = vmul.f32 %v503, %v565
        %v581 = vmul.f32 %v505, %v569
        %v582 = vmul.f32 %v507, %v565
        %v583 = vmul.f32 %v509, %v569
        %v584 = vmul.f32 %v513, %v565
        %v585 = vmul.f32 %v515, %v569
        %v586 = vmul.f32 %v517, %v565
        %v587 = vmul.f32 %v519, %v569
        %v588 = vmul.f32 %v523, %v565
        %v589 = vmul.f32 %v525, %v569
        %v590 = vmul.f32 %v527, %v565
        %v591 = vmul.f32 %v529, %v569
        %v592 = vmul.f32 %v533, %v565
        %v593 = vmul.f32 %v535, %v569
        %v594 = vmul.f32 %v537, %v565
        %v595 = vmul.f32 %v539, %v569
        %v596 = vmul.f32 %v543, %v565
        %v597 = vmul.f32 %v545, %v569
        %v598 = vmul.f32 %v547, %v565
        %v599 = vmul.f32 %v549, %v569
        %v600 = vmul.f32 %v553, %v565
        %v601 = vmul.f32 %v555, %v569
        %v602 = vmul.f32 %v557, %v565
        %v603 = vmul.f32 %v559, %v569
        %v605 = vlaneseq
        %v606 = vshrl.u32 %v605, 7
        %v607 = vsub.s32 0, %v606
        %v608 = vrot.slane %v326, %v607
        %v609 = vlaneseq
        %v610 = vshrl.u32 %v609, 7
        %v611 = vsub.s32 1, %v610
        %v612 = vrot.slane %v326, %v611
        %v615 = vadd.f32 %v572, %v608
        %v616 = vadd.f32 %v573, %v612
        %v617 = vadd.f32 %v574, %v608
        %v618 = vadd.f32 %v575, %v612
        %v619 = vadd.f32 %v576, %v608
        %v620 = vadd.f32 %v577, %v612
        %v621 = vadd.f32 %v578, %v608
        %v622 = vadd.f32 %v579, %v612
        %v623 = vadd.f32 %v580, %v608
        %v624 = vadd.f32 %v581, %v612
        %v625 = vadd.f32 %v582, %v608
        %v626 = vadd.f32 %v583, %v612
        %v627 = vadd.f32 %v584, %v608
        %v628 = vadd.f32 %v585, %v612
        %v629 = vadd.f32 %v586, %v608
        %v630 = vadd.f32 %v587, %v612
        %v631 = vadd.f32 %v588, %v608
        %v632 = vadd.f32 %v589, %v612
        %v633 = vadd.f32 %v590, %v608
        %v634 = vadd.f32 %v591, %v612
        %v635 = vadd.f32 %v592, %v608
        %v636 = vadd.f32 %v593, %v612
        %v637 = vadd.f32 %v594, %v608
        %v638 = vadd.f32 %v595, %v612
        %v639 = vadd.f32 %v596, %v608
        %v640 = vadd.f32 %v597, %v612
        %v641 = vadd.f32 %v598, %v608
        %v642 = vadd.f32 %v599, %v612
        %v643 = vadd.f32 %v600, %v608
        %v644 = vadd.f32 %v601, %v612
        %v645 = vadd.f32 %v602, %v608
        %v646 = vadd.f32 %v603, %v612
        %v647 = vmax.f32 %v615, 0.0
        %v648 = vmax.f32 %v616, 0.0
        %v649 = vmax.f32 %v617, 0.0
        %v650 = vmax.f32 %v618, 0.0
        %v651 = vmax.f32 %v619, 0.0
        %v652 = vmax.f32 %v620, 0.0
        %v653 = vmax.f32 %v621, 0.0
        %v654 = vmax.f32 %v622, 0.0
        %v655 = vmax.f32 %v623, 0.0
        %v656 = vmax.f32 %v624, 0.0
        %v657 = vmax.f32 %v625, 0.0
        %v658 = vmax.f32 %v626, 0.0
        %v659 = vmax.f32 %v627, 0.0
        %v660 = vmax.f32 %v628, 0.0
        %v661 = vmax.f32 %v629, 0.0
        %v662 = vmax.f32 %v630, 0.0
        %v663 = vmax.f32 %v631, 0.0
        %v664 = vmax.f32 %v632, 0.0
        %v665 = vmax.f32 %v633, 0.0
        %v666 = vmax.f32 %v634, 0.0
        %v667 = vmax.f32 %v635, 0.0
        %v668 = vmax.f32 %v636, 0.0
        %v669 = vmax.f32 %v637, 0.0
        %v670 = vmax.f32 %v638, 0.0
        %v671 = vmax.f32 %v639, 0.0
        %v672 = vmax.f32 %v640, 0.0
        %v673 = vmax.f32 %v641, 0.0
        %v674 = vmax.f32 %v642, 0.0
        %v675 = vmax.f32 %v643, 0.0
        %v676 = vmax.f32 %v644, 0.0
        %v677 = vmax.f32 %v645, 0.0
        %v678 = vmax.f32 %v646, 0.0
        %v679 = vpack.c.bf16 %v649, %v647
        %v680 = vpack.c.bf16 %v650, %v648
        %v681 = vpack.c.bf16 %v653, %v651
        %v682 = vpack.c.bf16 %v654, %v652
        %v683 = vpack.c.bf16 %v657, %v655
        %v684 = vpack.c.bf16 %v658, %v656
        %v685 = vpack.c.bf16 %v661, %v659
        %v686 = vpack.c.bf16 %v662, %v660
        %v687 = vpack.c.bf16 %v665, %v663
        %v688 = vpack.c.bf16 %v666, %v664
        %v689 = vpack.c.bf16 %v669, %v667
        %v690 = vpack.c.bf16 %v670, %v668
        %v691 = vpack.c.bf16 %v673, %v671
        %v692 = vpack.c.bf16 %v674, %v672
        %v693 = vpack.c.bf16 %v677, %v675
        %v694 = vpack.c.bf16 %v678, %v676
        %v695 = vld [vmem:[%s2] sm:$0xf]
        %v696 = vld [vmem:[%s2 + $0x4] sm:$0xf]
        %v697 = vld [vmem:[%s2 + $0x8] sm:$0xf]
        %v698 = vld [vmem:[%s2 + $0xc] sm:$0xf]
        %v699 = vld [vmem:[%s2 + $0x10] sm:$0xf]
        %v700 = vld [vmem:[%s2 + $0x14] sm:$0xf]
        %v701 = vld [vmem:[%s2 + $0x18] sm:$0xf]
        %v702 = vld [vmem:[%s2 + $0x1c] sm:$0xf]
        %v703 = vld [vmem:[%s2 + $0x20] sm:$0xf]
        %v704 = vld [vmem:[%s2 + $0x24] sm:$0xf]
        %v705 = vld [vmem:[%s2 + $0x28] sm:$0xf]
        %v706 = vld [vmem:[%s2 + $0x2c] sm:$0xf]
        %v707 = vld [vmem:[%s2 + $0x30] sm:$0xf]
        %v708 = vld [vmem:[%s2 + $0x34] sm:$0xf]
        %v709 = vld [vmem:[%s2 + $0x38] sm:$0xf]
        %v710 = vld [vmem:[%s2 + $0x3c] sm:$0xf]
        %v711 = vld [vmem:[%s2 + $0x40] sm:$0xf]
        %v712 = vld [vmem:[%s2 + $0x44] sm:$0xf]
        %v713 = vld [vmem:[%s2 + $0x48] sm:$0xf]
        %v714 = vld [vmem:[%s2 + $0x4c] sm:$0xf]
        %v715 = vld [vmem:[%s2 + $0x50] sm:$0xf]
        %v716 = vld [vmem:[%s2 + $0x54] sm:$0xf]
        %v717 = vld [vmem:[%s2 + $0x58] sm:$0xf]
        %v718 = vld [vmem:[%s2 + $0x5c] sm:$0xf]
        %v719 = vld [vmem:[%s2 + $0x60] sm:$0xf]
        %v720 = vld [vmem:[%s2 + $0x64] sm:$0xf]
        %v721 = vld [vmem:[%s2 + $0x68] sm:$0xf]
        %v722 = vld [vmem:[%s2 + $0x6c] sm:$0xf]
        %v723 = vld [vmem:[%s2 + $0x70] sm:$0xf]
        %v724 = vld [vmem:[%s2 + $0x74] sm:$0xf]
        %v725 = vld [vmem:[%s2 + $0x78] sm:$0xf]
        %v726 = vld [vmem:[%s2 + $0x7c] sm:$0xf]
        %v759 = vunpack.c.l.b16 %v695
        %v760 = vunpack.c.l.b16 %v696
        %v761 = vunpack.c.l.b16 %v697
        %v762 = vunpack.c.l.b16 %v698
        %v763 = vunpack.c.l.b16 %v699
        %v764 = vunpack.c.l.b16 %v700
        %v765 = vunpack.c.l.b16 %v701
        %v766 = vunpack.c.l.b16 %v702
        %v767 = vunpack.c.l.b16 %v703
        %v768 = vunpack.c.l.b16 %v704
        %v769 = vunpack.c.l.b16 %v705
        %v770 = vunpack.c.l.b16 %v706
        %v771 = vunpack.c.l.b16 %v707
        %v772 = vunpack.c.l.b16 %v708
        %v773 = vunpack.c.l.b16 %v709
        %v774 = vunpack.c.l.b16 %v710
        %v775 = vunpack.c.l.b16 %v711
        %v776 = vunpack.c.l.b16 %v712
        %v777 = vunpack.c.l.b16 %v713
        %v778 = vunpack.c.l.b16 %v714
        %v779 = vunpack.c.l.b16 %v715
        %v780 = vunpack.c.l.b16 %v716
        %v781 = vunpack.c.l.b16 %v717
        %v782 = vunpack.c.l.b16 %v718
        %v783 = vunpack.c.l.b16 %v719
        %v784 = vunpack.c.l.b16 %v720
        %v785 = vunpack.c.l.b16 %v721
        %v786 = vunpack.c.l.b16 %v722
        %v787 = vunpack.c.l.b16 %v723
        %v788 = vunpack.c.l.b16 %v724
        %v789 = vunpack.c.l.b16 %v725
        %v790 = vunpack.c.l.b16 %v726
        %v791 = vpack.c.b16 %v760, %v759
        %v792 = vpack.c.b16 %v762, %v761
        %v793 = vpack.c.b16 %v764, %v763
        %v794 = vpack.c.b16 %v766, %v765
        %v795 = vpack.c.b16 %v768, %v767
        %v796 = vpack.c.b16 %v770, %v769
        %v797 = vpack.c.b16 %v772, %v771
        %v798 = vpack.c.b16 %v774, %v773
        %v799 = vpack.c.b16 %v776, %v775
        %v800 = vpack.c.b16 %v778, %v777
        %v801 = vpack.c.b16 %v780, %v779
        %v802 = vpack.c.b16 %v782, %v781
        %v803 = vpack.c.b16 %v784, %v783
        %v804 = vpack.c.b16 %v786, %v785
        %v805 = vpack.c.b16 %v788, %v787
        %v806 = vpack.c.b16 %v790, %v789
        %823 = vmatprep.subr.bf16.mxu0 0
        %824 = vmatpush1.bf16.msra.mxu0 %v791
        %825 = vmatprep.subr.bf16.mxu0 0
        %826 = vmatpush1.bf16.msra.mxu0 %v792
        %827 = vmatprep.subr.bf16.mxu0 0
        %828 = vmatpush1.bf16.msra.mxu0 %v793
        %829 = vmatprep.subr.bf16.mxu0 0
        %830 = vmatpush1.bf16.msra.mxu0 %v794
        %831 = vmatprep.subr.bf16.mxu0 0
        %832 = vmatpush1.bf16.msra.mxu0 %v795
        %833 = vmatprep.subr.bf16.mxu0 0
        %834 = vmatpush1.bf16.msra.mxu0 %v796
        %835 = vmatprep.subr.bf16.mxu0 0
        %836 = vmatpush1.bf16.msra.mxu0 %v797
        %837 = vmatprep.subr.bf16.mxu0 0
        %838 = vmatpush1.bf16.msra.mxu0 %v798
        %839 = vmatprep.subr.bf16.mxu0 0
        %840 = vmatpush1.bf16.msra.mxu0 %v799
        %841 = vmatprep.subr.bf16.mxu0 0
        %842 = vmatpush1.bf16.msra.mxu0 %v800
        %843 = vmatprep.subr.bf16.mxu0 0
        %844 = vmatpush1.bf16.msra.mxu0 %v801
        %845 = vmatprep.subr.bf16.mxu0 0
        %846 = vmatpush1.bf16.msra.mxu0 %v802
        %847 = vmatprep.subr.bf16.mxu0 0
        %848 = vmatpush1.bf16.msra.mxu0 %v803
        %849 = vmatprep.subr.bf16.mxu0 0
        %850 = vmatpush1.bf16.msra.mxu0 %v804
        %851 = vmatprep.subr.bf16.mxu0 0
        %852 = vmatpush1.bf16.msra.mxu0 %v805
        %853 = vmatprep.subr.bf16.mxu0 0
        %854 = vmatpush1.bf16.msra.mxu0 %v806
        %855 = vmatprep.mubr.bf16.mxu0 %v680
        %856 = vmatmul.mubr.bf16.gmra.mrb[0].mxu0 %v679
        %v857 = vpop.f32.mrb[0].mxu0
        %v858 = vadd.f32 0.0, %v857
        %v859 = vpop.f32.mrb[0].mxu0
        %v860 = vpop.f32.mrb[0].mxu0
        %v861 = vadd.f32 0.0, %v860
        %v862 = vpop.f32.mrb[0].mxu0
        %863 = vmatprep.mubr.bf16.mxu0 %v682
        %864 = vmatmul.mubr.bf16.gmra.mrb[0].mxu0 %v681
        %v865 = vpop.f32.mrb[0].mxu0
        %v866 = vadd.f32 0.0, %v865
        %v867 = vpop.f32.mrb[0].mxu0
        %v868 = vpop.f32.mrb[0].mxu0
        %v869 = vadd.f32 0.0, %v868
        %v870 = vpop.f32.mrb[0].mxu0
        %871 = vmatprep.mubr.bf16.mxu0 %v684
        %872 = vmatmul.mubr.bf16.gmra.mrb[0].mxu0 %v683
        %v873 = vpop.f32.mrb[0].mxu0
        %v874 = vadd.f32 0.0, %v873
        %v875 = vpop.f32.mrb[0].mxu0
        %v876 = vpop.f32.mrb[0].mxu0
        %v877 = vadd.f32 0.0, %v876
        %v878 = vpop.f32.mrb[0].mxu0
        %879 = vmatprep.mubr.bf16.mxu0 %v686
        %880 = vmatmul.mubr.bf16.gmra.mrb[0].mxu0 %v685
        %v881 = vpop.f32.mrb[0].mxu0
        %v882 = vadd.f32 0.0, %v881
        %v883 = vpop.f32.mrb[0].mxu0
        %v884 = vpop.f32.mrb[0].mxu0
        %v885 = vadd.f32 0.0, %v884
        %v886 = vpop.f32.mrb[0].mxu0
        %887 = vmatprep.mubr.bf16.mxu0 %v688
        %888 = vmatmul.mubr.bf16.gmra.mrb[0].mxu0 %v687
        %v889 = vpop.f32.mrb[0].mxu0
        %v890 = vadd.f32 0.0, %v889
        %v891 = vpop.f32.mrb[0].mxu0
        %v892 = vpop.f32.mrb[0].mxu0
        %v893 = vadd.f32 0.0, %v892
        %v894 = vpop.f32.mrb[0].mxu0
        %895 = vmatprep.mubr.bf16.mxu0 %v690
        %896 = vmatmul.mubr.bf16.gmra.mrb[0].mxu0 %v689
        %v897 = vpop.f32.mrb[0].mxu0
        %v898 = vadd.f32 0.0, %v897
        %v899 = vpop.f32.mrb[0].mxu0
        %v900 = vpop.f32.mrb[0].mxu0
        %v901 = vadd.f32 0.0, %v900
        %v902 = vpop.f32.mrb[0].mxu0
        %903 = vmatprep.mubr.bf16.mxu0 %v692
        %904 = vmatmul.mubr.bf16.gmra.mrb[0].mxu0 %v691
        %v905 = vpop.f32.mrb[0].mxu0
        %v906 = vadd.f32 0.0, %v905
        %v907 = vpop.f32.mrb[0].mxu0
        %v908 = vpop.f32.mrb[0].mxu0
        %v909 = vadd.f32 0.0, %v908
        %v910 = vpop.f32.mrb[0].mxu0
        %911 = vmatprep.mubr.bf16.mxu0 %v694
        %912 = vmatmul.mubr.bf16.gmra.mrb[0].mxu0 %v693
        %v913 = vpop.f32.mrb[0].mxu0
        %v914 = vadd.f32 0.0, %v913
        %v915 = vpop.f32.mrb[0].mxu0
        %v916 = vpop.f32.mrb[0].mxu0
        %v917 = vadd.f32 0.0, %v916
        %v918 = vpop.f32.mrb[0].mxu0
        %919 = vdwg.mxu0
        %v921 = vlaneseq
        %v922 = vshrl.u32 %v921, 7
        %v923 = vsub.s32 0, %v922
        %v924 = vrot.slane %v327, %v923
        %v926 = vmul.f32 %v858, %v924
        %v927 = vmul.f32 %v861, %v924
        %v928 = vmul.f32 %v866, %v924
        %v929 = vmul.f32 %v869, %v924
        %v930 = vmul.f32 %v874, %v924
        %v931 = vmul.f32 %v877, %v924
        %v932 = vmul.f32 %v882, %v924
        %v933 = vmul.f32 %v885, %v924
        %v934 = vmul.f32 %v890, %v924
        %v935 = vmul.f32 %v893, %v924
        %v936 = vmul.f32 %v898, %v924
        %v937 = vmul.f32 %v901, %v924
        %v938 = vmul.f32 %v906, %v924
        %v939 = vmul.f32 %v909, %v924
        %v940 = vmul.f32 %v914, %v924
        %v941 = vmul.f32 %v917, %v924
        %v943 = vlaneseq
        %v944 = vshrl.u32 %v943, 7
        %v945 = vsub.s32 0, %v944
        %v946 = vrot.slane %v328, %v945
        %v948 = vadd.f32 %v926, %v946
        %v949 = vadd.f32 %v927, %v946
        %v950 = vadd.f32 %v928, %v946
        %v951 = vadd.f32 %v929, %v946
        %v952 = vadd.f32 %v930, %v946
        %v953 = vadd.f32 %v931, %v946
        %v954 = vadd.f32 %v932, %v946
        %v955 = vadd.f32 %v933, %v946
        %v956 = vadd.f32 %v934, %v946
        %v957 = vadd.f32 %v935, %v946
        %v958 = vadd.f32 %v936, %v946
        %v959 = vadd.f32 %v937, %v946
        %v960 = vadd.f32 %v938, %v946
        %v961 = vadd.f32 %v939, %v946
        %v962 = vadd.f32 %v940, %v946
        %v963 = vadd.f32 %v941, %v946
        %v964 = vmax.f32 %v948, 0.0
        %v965 = vmax.f32 %v949, 0.0
        %v966 = vmax.f32 %v950, 0.0
        %v967 = vmax.f32 %v951, 0.0
        %v968 = vmax.f32 %v952, 0.0
        %v969 = vmax.f32 %v953, 0.0
        %v970 = vmax.f32 %v954, 0.0
        %v971 = vmax.f32 %v955, 0.0
        %v972 = vmax.f32 %v956, 0.0
        %v973 = vmax.f32 %v957, 0.0
        %v974 = vmax.f32 %v958, 0.0
        %v975 = vmax.f32 %v959, 0.0
        %v976 = vmax.f32 %v960, 0.0
        %v977 = vmax.f32 %v961, 0.0
        %v978 = vmax.f32 %v962, 0.0
        %v979 = vmax.f32 %v963, 0.0
        %v980 = vpack.c.bf16 %v965, %v964
        %v981 = vpack.c.bf16 %v967, %v966
        %v982 = vpack.c.bf16 %v969, %v968
        %v983 = vpack.c.bf16 %v971, %v970
        %v984 = vpack.c.bf16 %v973, %v972
        %v985 = vpack.c.bf16 %v975, %v974
        %v986 = vpack.c.bf16 %v977, %v976
        %v987 = vpack.c.bf16 %v979, %v978
        %v988 = vld [vmem:[#allocation2] sm:$0xff]
        %v989 = vld [vmem:[#allocation2 + $0x8] sm:$0xf]
        %v990 = vld [vmem:[#allocation2 + $0xc] sm:$0xff]
        %v991 = vld [vmem:[#allocation2 + $0x14] sm:$0xf]
        %v992 = vld [vmem:[#allocation2 + $0x18] sm:$0xff]
        %v993 = vld [vmem:[#allocation2 + $0x20] sm:$0xf]
        %v994 = vld [vmem:[#allocation2 + $0x24] sm:$0xff]
        %v995 = vld [vmem:[#allocation2 + $0x2c] sm:$0xf]
        %v996 = vld [vmem:[#allocation2 + $0x30] sm:$0xff]
        %v997 = vld [vmem:[#allocation2 + $0x38] sm:$0xf]
        %v998 = vld [vmem:[#allocation2 + $0x3c] sm:$0xff]
        %v999 = vld [vmem:[#allocation2 + $0x44] sm:$0xf]
        %v1000 = vld [vmem:[#allocation2 + $0x48] sm:$0xff]
        %v1001 = vld [vmem:[#allocation2 + $0x50] sm:$0xf]
        %v1002 = vld [vmem:[#allocation2 + $0x54] sm:$0xff]
        %v1003 = vld [vmem:[#allocation2 + $0x5c] sm:$0xf]
        %v1004 = vld [vmem:[#allocation2 + $0x60] sm:$0xff]
        %v1005 = vld [vmem:[#allocation2 + $0x68] sm:$0xf]
        %v1006 = vld [vmem:[#allocation2 + $0x6c] sm:$0xff]
        %v1007 = vld [vmem:[#allocation2 + $0x74] sm:$0xf]
        %v1008 = vld [vmem:[#allocation2 + $0x78] sm:$0xff]
        %v1009 = vld [vmem:[#allocation2 + $0x80] sm:$0xf]
        %v1010 = vld [vmem:[#allocation2 + $0x84] sm:$0xff]
        %v1011 = vld [vmem:[#allocation2 + $0x8c] sm:$0xf]
        %v1012 = vld [vmem:[#allocation2 + $0x90] sm:$0xff]
        %v1013 = vld [vmem:[#allocation2 + $0x98] sm:$0xf]
        %v1014 = vld [vmem:[#allocation2 + $0x9c] sm:$0xff]
        %v1015 = vld [vmem:[#allocation2 + $0xa4] sm:$0xf]
        %v1016 = vld [vmem:[#allocation2 + $0xa8] sm:$0xff]
        %v1017 = vld [vmem:[#allocation2 + $0xb0] sm:$0xf]
        %v1018 = vld [vmem:[#allocation2 + $0xb4] sm:$0xff]
        %v1019 = vld [vmem:[#allocation2 + $0xbc] sm:$0xf]
        %v1052 = vunpack.c.l.b16 %v988
        %v1053 = vunpack.c.h.b16 %v988
        %v1054 = vunpack.c.l.b16 %v989
        %v1055 = vunpack.c.l.b16 %v990
        %v1056 = vunpack.c.h.b16 %v990
        %v1057 = vunpack.c.l.b16 %v991
        %v1058 = vunpack.c.l.b16 %v992
        %v1059 = vunpack.c.h.b16 %v992
        %v1060 = vunpack.c.l.b16 %v993
        %v1061 = vunpack.c.l.b16 %v994
        %v1062 = vunpack.c.h.b16 %v994
        %v1063 = vunpack.c.l.b16 %v995
        %v1064 = vunpack.c.l.b16 %v996
        %v1065 = vunpack.c.h.b16 %v996
        %v1066 = vunpack.c.l.b16 %v997
        %v1067 = vunpack.c.l.b16 %v998
        %v1068 = vunpack.c.h.b16 %v998
        %v1069 = vunpack.c.l.b16 %v999
        %v1070 = vunpack.c.l.b16 %v1000
        %v1071 = vunpack.c.h.b16 %v1000
        %v1072 = vunpack.c.l.b16 %v1001
        %v1073 = vunpack.c.l.b16 %v1002
        %v1074 = vunpack.c.h.b16 %v1002
        %v1075 = vunpack.c.l.b16 %v1003
        %v1076 = vunpack.c.l.b16 %v1004
        %v1077 = vunpack.c.h.b16 %v1004
        %v1078 = vunpack.c.l.b16 %v1005
        %v1079 = vunpack.c.l.b16 %v1006
        %v1080 = vunpack.c.h.b16 %v1006
        %v1081 = vunpack.c.l.b16 %v1007
        %v1082 = vunpack.c.l.b16 %v1008
        %v1083 = vunpack.c.h.b16 %v1008
        %v1084 = vunpack.c.l.b16 %v1009
        %v1085 = vunpack.c.l.b16 %v1010
        %v1086 = vunpack.c.h.b16 %v1010
        %v1087 = vunpack.c.l.b16 %v1011
        %v1088 = vunpack.c.l.b16 %v1012
        %v1089 = vunpack.c.h.b16 %v1012
        %v1090 = vunpack.c.l.b16 %v1013
        %v1091 = vunpack.c.l.b16 %v1014
        %v1092 = vunpack.c.h.b16 %v1014
        %v1093 = vunpack.c.l.b16 %v1015
        %v1094 = vunpack.c.l.b16 %v1016
        %v1095 = vunpack.c.h.b16 %v1016
        %v1096 = vunpack.c.l.b16 %v1017
        %v1097 = vunpack.c.l.b16 %v1018
        %v1098 = vunpack.c.h.b16 %v1018
        %v1099 = vunpack.c.l.b16 %v1019
        %v1100 = vpack.c.b16 %v1055, %v1052
        %v1101 = vpack.c.b16 %v1056, %v1053
        %v1102 = vpack.c.b16 %v1057, %v1054
        %v1103 = vpack.c.b16 %v1061, %v1058
        %v1104 = vpack.c.b16 %v1062, %v1059
        %v1105 = vpack.c.b16 %v1063, %v1060
        %v1106 = vpack.c.b16 %v1067, %v1064
        %v1107 = vpack.c.b16 %v1068, %v1065
        %v1108 = vpack.c.b16 %v1069, %v1066
        %v1109 = vpack.c.b16 %v1073, %v1070
        %v1110 = vpack.c.b16 %v1074, %v1071
        %v1111 = vpack.c.b16 %v1075, %v1072
        %v1112 = vpack.c.b16 %v1079, %v1076
        %v1113 = vpack.c.b16 %v1080, %v1077
        %v1114 = vpack.c.b16 %v1081, %v1078
        %v1115 = vpack.c.b16 %v1085, %v1082
        %v1116 = vpack.c.b16 %v1086, %v1083
        %v1117 = vpack.c.b16 %v1087, %v1084
        %v1118 = vpack.c.b16 %v1091, %v1088
        %v1119 = vpack.c.b16 %v1092, %v1089
        %v1120 = vpack.c.b16 %v1093, %v1090
        %v1121 = vpack.c.b16 %v1097, %v1094
        %v1122 = vpack.c.b16 %v1098, %v1095
        %v1123 = vpack.c.b16 %v1099, %v1096
        %1148 = vmatprep.subr.bf16.mxu0 %v1101
        %1149 = vmatpush1.bf16.msra.mxu0 %v1100
        %1150 = vmatprep.subr.bf16.mxu0 %v1104
        %1151 = vmatpush1.bf16.msra.mxu0 %v1103
        %1152 = vmatprep.subr.bf16.mxu0 %v1107
        %1153 = vmatpush1.bf16.msra.mxu0 %v1106
        %1154 = vmatprep.subr.bf16.mxu0 %v1110
        %1155 = vmatpush1.bf16.msra.mxu0 %v1109
        %1156 = vmatprep.subr.bf16.mxu0 %v1113
        %1157 = vmatpush1.bf16.msra.mxu0 %v1112
        %1158 = vmatprep.subr.bf16.mxu0 %v1116
        %1159 = vmatpush1.bf16.msra.mxu0 %v1115
        %1160 = vmatprep.subr.bf16.mxu0 %v1119
        %1161 = vmatpush1.bf16.msra.mxu0 %v1118
        %1162 = vmatprep.subr.bf16.mxu0 %v1122
        %1163 = vmatpush1.bf16.msra.mxu0 %v1121
        %1164 = vmatprep.subr.bf16.mxu0 0
        %1165 = vmatpush1.bf16.msra.mxu0 0
        %1166 = vmatprep.subr.bf16.mxu0 0
        %1167 = vmatpush1.bf16.msra.mxu0 0
        %1168 = vmatprep.subr.bf16.mxu0 0
        %1169 = vmatpush1.bf16.msra.mxu0 0
        %1170 = vmatprep.subr.bf16.mxu0 0
        %1171 = vmatpush1.bf16.msra.mxu0 0
        %1172 = vmatprep.subr.bf16.mxu0 0
        %1173 = vmatpush1.bf16.msra.mxu0 0
        %1174 = vmatprep.subr.bf16.mxu0 0
        %1175 = vmatpush1.bf16.msra.mxu0 0
        %1176 = vmatprep.subr.bf16.mxu0 0
        %1177 = vmatpush1.bf16.msra.mxu0 0
        %1178 = vmatprep.subr.bf16.mxu0 0
        %1179 = vmatpush1.bf16.msra.mxu0 0
        %1180 = vmatprep.mubr.bf16.mxu0 0
        %1181 = vmatmul.mubr.bf16.gmra.mrb[0].mxu0 %v980
        %v1182 = vpop.f32.mrb[0].mxu0
        %v1183 = vadd.f32 0.0, %v1182
        %v1184 = vpop.f32.mrb[0].mxu0
        %v1185 = vadd.f32 0.0, %v1184
        %v1186 = vpop.f32.mrb[0].mxu0
        %v1187 = vadd.f32 0.0, %v1186
        %v1188 = vpop.f32.mrb[0].mxu0
        %v1189 = vadd.f32 0.0, %v1188
        %1190 = vmatprep.mubr.bf16.mxu0 0
        %1191 = vmatmul.mubr.bf16.gmra.mrb[0].mxu0 %v981
        %v1192 = vpop.f32.mrb[0].mxu0
        %v1193 = vadd.f32 0.0, %v1192
        %v1194 = vpop.f32.mrb[0].mxu0
        %v1195 = vadd.f32 0.0, %v1194
        %v1196 = vpop.f32.mrb[0].mxu0
        %v1197 = vadd.f32 0.0, %v1196
        %v1198 = vpop.f32.mrb[0].mxu0
        %v1199 = vadd.f32 0.0, %v1198
        %1200 = vmatprep.mubr.bf16.mxu0 0
        %1201 = vmatmul.mubr.bf16.gmra.mrb[0].mxu0 %v982
        %v1202 = vpop.f32.mrb[0].mxu0
        %v1203 = vadd.f32 0.0, %v1202
        %v1204 = vpop.f32.mrb[0].mxu0
        %v1205 = vadd.f32 0.0, %v1204
        %v1206 = vpop.f32.mrb[0].mxu0
        %v1207 = vadd.f32 0.0, %v1206
        %v1208 = vpop.f32.mrb[0].mxu0
        %v1209 = vadd.f32 0.0, %v1208
        %1210 = vmatprep.mubr.bf16.mxu0 0
        %1211 = vmatmul.mubr.bf16.gmra.mrb[0].mxu0 %v983
        %v1212 = vpop.f32.mrb[0].mxu0
        %v1213 = vadd.f32 0.0, %v1212
        %v1214 = vpop.f32.mrb[0].mxu0
        %v1215 = vadd.f32 0.0, %v1214
        %v1216 = vpop.f32.mrb[0].mxu0
        %v1217 = vadd.f32 0.0, %v1216
        %v1218 = vpop.f32.mrb[0].mxu0
        %v1219 = vadd.f32 0.0, %v1218
        %1220 = vmatprep.mubr.bf16.mxu0 0
        %1221 = vmatmul.mubr.bf16.gmra.mrb[0].mxu0 %v984
        %v1222 = vpop.f32.mrb[0].mxu0
        %v1223 = vadd.f32 0.0, %v1222
        %v1224 = vpop.f32.mrb[0].mxu0
        %v1225 = vadd.f32 0.0, %v1224
        %v1226 = vpop.f32.mrb[0].mxu0
        %v1227 = vadd.f32 0.0, %v1226
        %v1228 = vpop.f32.mrb[0].mxu0
        %v1229 = vadd.f32 0.0, %v1228
        %1230 = vmatprep.mubr.bf16.mxu0 0
        %1231 = vmatmul.mubr.bf16.gmra.mrb[0].mxu0 %v985
        %v1232 = vpop.f32.mrb[0].mxu0
        %v1233 = vadd.f32 0.0, %v1232
        %v1234 = vpop.f32.mrb[0].mxu0
        %v1235 = vadd.f32 0.0, %v1234
        %v1236 = vpop.f32.mrb[0].mxu0
        %v1237 = vadd.f32 0.0, %v1236
        %v1238 = vpop.f32.mrb[0].mxu0
        %v1239 = vadd.f32 0.0, %v1238
        %1240 = vmatprep.mubr.bf16.mxu0 0
        %1241 = vmatmul.mubr.bf16.gmra.mrb[0].mxu0 %v986
        %v1242 = vpop.f32.mrb[0].mxu0
        %v1243 = vadd.f32 0.0, %v1242
        %v1244 = vpop.f32.mrb[0].mxu0
        %v1245 = vadd.f32 0.0, %v1244
        %v1246 = vpop.f32.mrb[0].mxu0
        %v1247 = vadd.f32 0.0, %v1246
        %v1248 = vpop.f32.mrb[0].mxu0
        %v1249 = vadd.f32 0.0, %v1248
        %1250 = vmatprep.mubr.bf16.mxu0 0
        %1251 = vmatmul.mubr.bf16.gmra.mrb[0].mxu0 %v987
        %v1252 = vpop.f32.mrb[0].mxu0
        %v1253 = vadd.f32 0.0, %v1252
        %v1254 = vpop.f32.mrb[0].mxu0
        %v1255 = vadd.f32 0.0, %v1254
        %v1256 = vpop.f32.mrb[0].mxu0
        %v1257 = vadd.f32 0.0, %v1256
        %v1258 = vpop.f32.mrb[0].mxu0
        %v1259 = vadd.f32 0.0, %v1258
        %1260 = vdwg.mxu0
        %1261 = vmatprep.subr.bf16.mxu0 0
        %1262 = vmatpush1.bf16.msra.mxu0 %v1102
        %1263 = vmatprep.subr.bf16.mxu0 0
        %1264 = vmatpush1.bf16.msra.mxu0 %v1105
        %1265 = vmatprep.subr.bf16.mxu0 0
        %1266 = vmatpush1.bf16.msra.mxu0 %v1108
        %1267 = vmatprep.subr.bf16.mxu0 0
        %1268 = vmatpush1.bf16.msra.mxu0 %v1111
        %1269 = vmatprep.subr.bf16.mxu0 0
        %1270 = vmatpush1.bf16.msra.mxu0 %v1114
        %1271 = vmatprep.subr.bf16.mxu0 0
        %1272 = vmatpush1.bf16.msra.mxu0 %v1117
        %1273 = vmatprep.subr.bf16.mxu0 0
        %1274 = vmatpush1.bf16.msra.mxu0 %v1120
        %1275 = vmatprep.subr.bf16.mxu0 0
        %1276 = vmatpush1.bf16.msra.mxu0 %v1123
        %1277 = vmatprep.subr.bf16.mxu0 0
        %1278 = vmatpush1.bf16.msra.mxu0 0
        %1279 = vmatprep.subr.bf16.mxu0 0
        %1280 = vmatpush1.bf16.msra.mxu0 0
        %1281 = vmatprep.subr.bf16.mxu0 0
        %1282 = vmatpush1.bf16.msra.mxu0 0
        %1283 = vmatprep.subr.bf16.mxu0 0
        %1284 = vmatpush1.bf16.msra.mxu0 0
        %1285 = vmatprep.subr.bf16.mxu0 0
        %1286 = vmatpush1.bf16.msra.mxu0 0
        %1287 = vmatprep.subr.bf16.mxu0 0
        %1288 = vmatpush1.bf16.msra.mxu0 0
        %1289 = vmatprep.subr.bf16.mxu0 0
        %1290 = vmatpush1.bf16.msra.mxu0 0
        %1291 = vmatprep.subr.bf16.mxu0 0
        %1292 = vmatpush1.bf16.msra.mxu0 0
        %1293 = vmatprep.mubr.bf16.mxu0 0
        %1294 = vmatmul.mubr.bf16.gmra.mrb[0].mxu0 %v980
        %v1295 = vpop.f32.mrb[0].mxu0
        %v1296 = vadd.f32 0.0, %v1295
        %v1297 = vpop.f32.mrb[0].mxu0
        %v1298 = vpop.f32.mrb[0].mxu0
        %v1299 = vadd.f32 0.0, %v1298
        %v1300 = vpop.f32.mrb[0].mxu0
        %1301 = vmatprep.mubr.bf16.mxu0 0
        %1302 = vmatmul.mubr.bf16.gmra.mrb[0].mxu0 %v981
        %v1303 = vpop.f32.mrb[0].mxu0
        %v1304 = vadd.f32 0.0, %v1303
        %v1305 = vpop.f32.mrb[0].mxu0
        %v1306 = vpop.f32.mrb[0].mxu0
        %v1307 = vadd.f32 0.0, %v1306
        %v1308 = vpop.f32.mrb[0].mxu0
        %1309 = vmatprep.mubr.bf16.mxu0 0
        %1310 = vmatmul.mubr.bf16.gmra.mrb[0].mxu0 %v982
        %v1311 = vpop.f32.mrb[0].mxu0
        %v1312 = vadd.f32 0.0, %v1311
        %v1313 = vpop.f32.mrb[0].mxu0
        %v1314 = vpop.f32.mrb[0].mxu0
        %v1315 = vadd.f32 0.0, %v1314
        %v1316 = vpop.f32.mrb[0].mxu0
        %1317 = vmatprep.mubr.bf16.mxu0 0
        %1318 = vmatmul.mubr.bf16.gmra.mrb[0].mxu0 %v983
        %v1319 = vpop.f32.mrb[0].mxu0
        %v1320 = vadd.f32 0.0, %v1319
        %v1321 = vpop.f32.mrb[0].mxu0
        %v1322 = vpop.f32.mrb[0].mxu0
        %v1323 = vadd.f32 0.0, %v1322
        %v1324 = vpop.f32.mrb[0].mxu0
        %1325 = vmatprep.mubr.bf16.mxu0 0
        %1326 = vmatmul.mubr.bf16.gmra.mrb[0].mxu0 %v984
        %v1327 = vpop.f32.mrb[0].mxu0
        %v1328 = vadd.f32 0.0, %v1327
        %v1329 = vpop.f32.mrb[0].mxu0
        %v1330 = vpop.f32.mrb[0].mxu0
        %v1331 = vadd.f32 0.0, %v1330
        %v1332 = vpop.f32.mrb[0].mxu0
        %1333 = vmatprep.mubr.bf16.mxu0 0
        %1334 = vmatmul.mubr.bf16.gmra.mrb[0].mxu0 %v985
        %v1335 = vpop.f32.mrb[0].mxu0
        %v1336 = vadd.f32 0.0, %v1335
        %v1337 = vpop.f32.mrb[0].mxu0
        %v1338 = vpop.f32.mrb[0].mxu0
        %v1339 = vadd.f32 0.0, %v1338
        %v1340 = vpop.f32.mrb[0].mxu0
        %1341 = vmatprep.mubr.bf16.mxu0 0
        %1342 = vmatmul.mubr.bf16.gmra.mrb[0].mxu0 %v986
        %v1343 = vpop.f32.mrb[0].mxu0
        %v1344 = vadd.f32 0.0, %v1343
        %v1345 = vpop.f32.mrb[0].mxu0
        %v1346 = vpop.f32.mrb[0].mxu0
        %v1347 = vadd.f32 0.0, %v1346
        %v1348 = vpop.f32.mrb[0].mxu0
        %1349 = vmatprep.mubr.bf16.mxu0 0
        %1350 = vmatmul.mubr.bf16.gmra.mrb[0].mxu0 %v987
        %v1351 = vpop.f32.mrb[0].mxu0
        %v1352 = vadd.f32 0.0, %v1351
        %v1353 = vpop.f32.mrb[0].mxu0
        %v1354 = vpop.f32.mrb[0].mxu0
        %v1355 = vadd.f32 0.0, %v1354
        %v1356 = vpop.f32.mrb[0].mxu0
        %1357 = vdwg.mxu0
        %v1358 = vld [vmem:[%s6 + $0x6] sm:$0x1]
        %v1360 = vlaneseq
        %v1361 = vshrl.u32 %v1360, 7
        %v1362 = vsub.s32 0, %v1361
        %v1363 = vrot.slane %v1358, %v1362
        %v1365 = vadd.f32 %v1183, %v1363
        %v1366 = vadd.f32 %v1187, %v1363
        %v1367 = vadd.f32 %v1193, %v1363
        %v1368 = vadd.f32 %v1197, %v1363
        %v1369 = vadd.f32 %v1203, %v1363
        %v1370 = vadd.f32 %v1207, %v1363
        %v1371 = vadd.f32 %v1213, %v1363
        %v1372 = vadd.f32 %v1217, %v1363
        %v1373 = vadd.f32 %v1223, %v1363
        %v1374 = vadd.f32 %v1227, %v1363
        %v1375 = vadd.f32 %v1233, %v1363
        %v1376 = vadd.f32 %v1237, %v1363
        %v1377 = vadd.f32 %v1243, %v1363
        %v1378 = vadd.f32 %v1247, %v1363
        %v1379 = vadd.f32 %v1253, %v1363
        %v1380 = vadd.f32 %v1257, %v1363
        %v1381 = vxor.u32 %v1365, 2147483648
        %v1382 = vxor.u32 %v1366, 2147483648
        %v1383 = vxor.u32 %v1367, 2147483648
        %v1384 = vxor.u32 %v1368, 2147483648
        %v1385 = vxor.u32 %v1369, 2147483648
        %v1386 = vxor.u32 %v1370, 2147483648
        %v1387 = vxor.u32 %v1371, 2147483648
        %v1388 = vxor.u32 %v1372, 2147483648
        %v1389 = vxor.u32 %v1373, 2147483648
        %v1390 = vxor.u32 %v1374, 2147483648
        %v1391 = vxor.u32 %v1375, 2147483648
        %v1392 = vxor.u32 %v1376, 2147483648
        %v1393 = vxor.u32 %v1377, 2147483648
        %v1394 = vxor.u32 %v1378, 2147483648
        %v1395 = vxor.u32 %v1379, 2147483648
        %v1396 = vxor.u32 %v1380, 2147483648
        %v1397 = vmul.f32 %v1381, 1.442695
        %v1398 = vpow.pop %v1397
        %v1399 = vmul.f32 %v1382, 1.442695
        %v1400 = vpow.pop %v1399
        %v1401 = vmul.f32 %v1383, 1.442695
        %v1402 = vpow.pop %v1401
        %v1403 = vmul.f32 %v1384, 1.442695
        %v1404 = vpow.pop %v1403
        %v1405 = vmul.f32 %v1385, 1.442695
        %v1406 = vpow.pop %v1405
        %v1407 = vmul.f32 %v1386, 1.442695
        %v1408 = vpow.pop %v1407
        %v1409 = vmul.f32 %v1387, 1.442695
        %v1410 = vpow.pop %v1409
        %v1411 = vmul.f32 %v1388, 1.442695
        %v1412 = vpow.pop %v1411
        %v1413 = vmul.f32 %v1389, 1.442695
        %v1414 = vpow.pop %v1413
        %v1415 = vmul.f32 %v1390, 1.442695
        %v1416 = vpow.pop %v1415
        %v1417 = vmul.f32 %v1391, 1.442695
        %v1418 = vpow.pop %v1417
        %v1419 = vmul.f32 %v1392, 1.442695
        %v1420 = vpow.pop %v1419
        %v1421 = vmul.f32 %v1393, 1.442695
        %v1422 = vpow.pop %v1421
        %v1423 = vmul.f32 %v1394, 1.442695
        %v1424 = vpow.pop %v1423
        %v1425 = vmul.f32 %v1395, 1.442695
        %v1426 = vpow.pop %v1425
        %v1427 = vmul.f32 %v1396, 1.442695
        %v1428 = vpow.pop %v1427
        %v1429 = vadd.f32 %v1398, 1.0
        %v1430 = vadd.f32 %v1400, 1.0
        %v1431 = vadd.f32 %v1402, 1.0
        %v1432 = vadd.f32 %v1404, 1.0
        %v1433 = vadd.f32 %v1406, 1.0
        %v1434 = vadd.f32 %v1408, 1.0
        %v1435 = vadd.f32 %v1410, 1.0
        %v1436 = vadd.f32 %v1412, 1.0
        %v1437 = vadd.f32 %v1414, 1.0
        %v1438 = vadd.f32 %v1416, 1.0
        %v1439 = vadd.f32 %v1418, 1.0
        %v1440 = vadd.f32 %v1420, 1.0
        %v1441 = vadd.f32 %v1422, 1.0
        %v1442 = vadd.f32 %v1424, 1.0
        %v1443 = vadd.f32 %v1426, 1.0
        %v1444 = vadd.f32 %v1428, 1.0
        %v1445 = vrcp.pop %v1429
        %v1446 = vmul.f32 1.0, %v1445
        %v1447 = vrcp.pop %v1430
        %v1448 = vmul.f32 1.0, %v1447
        %v1449 = vrcp.pop %v1431
        %v1450 = vmul.f32 1.0, %v1449
        %v1451 = vrcp.pop %v1432
        %v1452 = vmul.f32 1.0, %v1451
        %v1453 = vrcp.pop %v1433
        %v1454 = vmul.f32 1.0, %v1453
        %v1455 = vrcp.pop %v1434
        %v1456 = vmul.f32 1.0, %v1455
        %v1457 = vrcp.pop %v1435
        %v1458 = vmul.f32 1.0, %v1457
        %v1459 = vrcp.pop %v1436
        %v1460 = vmul.f32 1.0, %v1459
        %v1461 = vrcp.pop %v1437
        %v1462 = vmul.f32 1.0, %v1461
        %v1463 = vrcp.pop %v1438
        %v1464 = vmul.f32 1.0, %v1463
        %v1465 = vrcp.pop %v1439
        %v1466 = vmul.f32 1.0, %v1465
        %v1467 = vrcp.pop %v1440
        %v1468 = vmul.f32 1.0, %v1467
        %v1469 = vrcp.pop %v1441
        %v1470 = vmul.f32 1.0, %v1469
        %v1471 = vrcp.pop %v1442
        %v1472 = vmul.f32 1.0, %v1471
        %v1473 = vrcp.pop %v1443
        %v1474 = vmul.f32 1.0, %v1473
        %v1475 = vrcp.pop %v1444
        %v1476 = vmul.f32 1.0, %v1475
        %v1477 = vld [vmem:[%s6 + $0x7] sm:$0x1]
        %v1479 = vlaneseq
        %v1480 = vshrl.u32 %v1479, 7
        %v1481 = vsub.s32 0, %v1480
        %v1482 = vrot.slane %v1477, %v1481
        %v1484 = vadd.f32 %v1185, %v1482
        %v1485 = vadd.f32 %v1189, %v1482
        %v1486 = vadd.f32 %v1195, %v1482
        %v1487 = vadd.f32 %v1199, %v1482
        %v1488 = vadd.f32 %v1205, %v1482
        %v1489 = vadd.f32 %v1209, %v1482
        %v1490 = vadd.f32 %v1215, %v1482
        %v1491 = vadd.f32 %v1219, %v1482
        %v1492 = vadd.f32 %v1225, %v1482
        %v1493 = vadd.f32 %v1229, %v1482
        %v1494 = vadd.f32 %v1235, %v1482
        %v1495 = vadd.f32 %v1239, %v1482
        %v1496 = vadd.f32 %v1245, %v1482
        %v1497 = vadd.f32 %v1249, %v1482
        %v1498 = vadd.f32 %v1255, %v1482
        %v1499 = vadd.f32 %v1259, %v1482
        %v1500 = vxor.u32 %v1484, 2147483648
        %v1501 = vxor.u32 %v1485, 2147483648
        %v1502 = vxor.u32 %v1486, 2147483648
        %v1503 = vxor.u32 %v1487, 2147483648
        %v1504 = vxor.u32 %v1488, 2147483648
        %v1505 = vxor.u32 %v1489, 2147483648
        %v1506 = vxor.u32 %v1490, 2147483648
        %v1507 = vxor.u32 %v1491, 2147483648
        %v1508 = vxor.u32 %v1492, 2147483648
        %v1509 = vxor.u32 %v1493, 2147483648
        %v1510 = vxor.u32 %v1494, 2147483648
        %v1511 = vxor.u32 %v1495, 2147483648
        %v1512 = vxor.u32 %v1496, 2147483648
        %v1513 = vxor.u32 %v1497, 2147483648
        %v1514 = vxor.u32 %v1498, 2147483648
        %v1515 = vxor.u32 %v1499, 2147483648
        %v1516 = vmul.f32 %v1500, 1.442695
        %v1517 = vpow.pop %v1516
        %v1518 = vmul.f32 %v1501, 1.442695
        %v1519 = vpow.pop %v1518
        %v1520 = vmul.f32 %v1502, 1.442695
        %v1521 = vpow.pop %v1520
        %v1522 = vmul.f32 %v1503, 1.442695
        %v1523 = vpow.pop %v1522
        %v1524 = vmul.f32 %v1504, 1.442695
        %v1525 = vpow.pop %v1524
        %v1526 = vmul.f32 %v1505, 1.442695
        %v1527 = vpow.pop %v1526
        %v1528 = vmul.f32 %v1506, 1.442695
        %v1529 = vpow.pop %v1528
        %v1530 = vmul.f32 %v1507, 1.442695
        %v1531 = vpow.pop %v1530
        %v1532 = vmul.f32 %v1508, 1.442695
        %v1533 = vpow.pop %v1532
        %v1534 = vmul.f32 %v1509, 1.442695
        %v1535 = vpow.pop %v1534
        %v1536 = vmul.f32 %v1510, 1.442695
        %v1537 = vpow.pop %v1536
        %v1538 = vmul.f32 %v1511, 1.442695
        %v1539 = vpow.pop %v1538
        %v1540 = vmul.f32 %v1512, 1.442695
        %v1541 = vpow.pop %v1540
        %v1542 = vmul.f32 %v1513, 1.442695
        %v1543 = vpow.pop %v1542
        %v1544 = vmul.f32 %v1514, 1.442695
        %v1545 = vpow.pop %v1544
        %v1546 = vmul.f32 %v1515, 1.442695
        %v1547 = vpow.pop %v1546
        %v1548 = vadd.f32 %v1517, 1.0
        %v1549 = vadd.f32 %v1519, 1.0
        %v1550 = vadd.f32 %v1521, 1.0
        %v1551 = vadd.f32 %v1523, 1.0
        %v1552 = vadd.f32 %v1525, 1.0
        %v1553 = vadd.f32 %v1527, 1.0
        %v1554 = vadd.f32 %v1529, 1.0
        %v1555 = vadd.f32 %v1531, 1.0
        %v1556 = vadd.f32 %v1533, 1.0
        %v1557 = vadd.f32 %v1535, 1.0
        %v1558 = vadd.f32 %v1537, 1.0
        %v1559 = vadd.f32 %v1539, 1.0
        %v1560 = vadd.f32 %v1541, 1.0
        %v1561 = vadd.f32 %v1543, 1.0
        %v1562 = vadd.f32 %v1545, 1.0
        %v1563 = vadd.f32 %v1547, 1.0
        %v1564 = vrcp.pop %v1548
        %v1565 = vmul.f32 1.0, %v1564
        %v1566 = vrcp.pop %v1549
        %v1567 = vmul.f32 1.0, %v1566
        %v1568 = vrcp.pop %v1550
        %v1569 = vmul.f32 1.0, %v1568
        %v1570 = vrcp.pop %v1551
        %v1571 = vmul.f32 1.0, %v1570
        %v1572 = vrcp.pop %v1552
        %v1573 = vmul.f32 1.0, %v1572
        %v1574 = vrcp.pop %v1553
        %v1575 = vmul.f32 1.0, %v1574
        %v1576 = vrcp.pop %v1554
        %v1577 = vmul.f32 1.0, %v1576
        %v1578 = vrcp.pop %v1555
        %v1579 = vmul.f32 1.0, %v1578
        %v1580 = vrcp.pop %v1556
        %v1581 = vmul.f32 1.0, %v1580
        %v1582 = vrcp.pop %v1557
        %v1583 = vmul.f32 1.0, %v1582
        %v1584 = vrcp.pop %v1558
        %v1585 = vmul.f32 1.0, %v1584
        %v1586 = vrcp.pop %v1559
        %v1587 = vmul.f32 1.0, %v1586
        %v1588 = vrcp.pop %v1560
        %v1589 = vmul.f32 1.0, %v1588
        %v1590 = vrcp.pop %v1561
        %v1591 = vmul.f32 1.0, %v1590
        %v1592 = vrcp.pop %v1562
        %v1593 = vmul.f32 1.0, %v1592
        %v1594 = vrcp.pop %v1563
        %v1595 = vmul.f32 1.0, %v1594
        %v1596 = vld [vmem:[%s6 + $0x8] sm:$0x1]
        %v1598 = vlaneseq
        %v1599 = vshrl.u32 %v1598, 7
        %v1600 = vsub.s32 0, %v1599
        %v1601 = vrot.slane %v1596, %v1600
        %v1603 = vadd.f32 %v1296, %v1601
        %v1604 = vadd.f32 %v1299, %v1601
        %v1605 = vadd.f32 %v1304, %v1601
        %v1606 = vadd.f32 %v1307, %v1601
        %v1607 = vadd.f32 %v1312, %v1601
        %v1608 = vadd.f32 %v1315, %v1601
        %v1609 = vadd.f32 %v1320, %v1601
        %v1610 = vadd.f32 %v1323, %v1601
        %v1611 = vadd.f32 %v1328, %v1601
        %v1612 = vadd.f32 %v1331, %v1601
        %v1613 = vadd.f32 %v1336, %v1601
        %v1614 = vadd.f32 %v1339, %v1601
        %v1615 = vadd.f32 %v1344, %v1601
        %v1616 = vadd.f32 %v1347, %v1601
        %v1617 = vadd.f32 %v1352, %v1601
        %v1618 = vadd.f32 %v1355, %v1601
        %v1619 = vld [vmem:[%s6 + $0x9] sm:$0x1]
        %v1621 = vlaneseq
        %v1622 = vshrl.u32 %v1621, 7
        %v1623 = vsub.s32 0, %v1622
        %v1624 = vrot.slane %v1619, %v1623
        %v1626 = vmul.f32 %v1446, %v1624
        %v1627 = vmul.f32 %v1448, %v1624
        %v1628 = vmul.f32 %v1450, %v1624
        %v1629 = vmul.f32 %v1452, %v1624
        %v1630 = vmul.f32 %v1454, %v1624
        %v1631 = vmul.f32 %v1456, %v1624
        %v1632 = vmul.f32 %v1458, %v1624
        %v1633 = vmul.f32 %v1460, %v1624
        %v1634 = vmul.f32 %v1462, %v1624
        %v1635 = vmul.f32 %v1464, %v1624
        %v1636 = vmul.f32 %v1466, %v1624
        %v1637 = vmul.f32 %v1468, %v1624
        %v1638 = vmul.f32 %v1470, %v1624
        %v1639 = vmul.f32 %v1472, %v1624
        %v1640 = vmul.f32 %v1474, %v1624
        %v1641 = vmul.f32 %v1476, %v1624
        %v1642 = vadd.f32 %v1603, %v1626
        %v1643 = vadd.f32 %v1604, %v1627
        %v1644 = vadd.f32 %v1605, %v1628
        %v1645 = vadd.f32 %v1606, %v1629
        %v1646 = vadd.f32 %v1607, %v1630
        %v1647 = vadd.f32 %v1608, %v1631
        %v1648 = vadd.f32 %v1609, %v1632
        %v1649 = vadd.f32 %v1610, %v1633
        %v1650 = vadd.f32 %v1611, %v1634
        %v1651 = vadd.f32 %v1612, %v1635
        %v1652 = vadd.f32 %v1613, %v1636
        %v1653 = vadd.f32 %v1614, %v1637
        %v1654 = vadd.f32 %v1615, %v1638
        %v1655 = vadd.f32 %v1616, %v1639
        %v1656 = vadd.f32 %v1617, %v1640
        %v1657 = vadd.f32 %v1618, %v1641
        %v1658 = vtanh.pop %v1642
        %v1659 = vtanh.pop %v1643
        %v1660 = vtanh.pop %v1644
        %v1661 = vtanh.pop %v1645
        %v1662 = vtanh.pop %v1646
        %v1663 = vtanh.pop %v1647
        %v1664 = vtanh.pop %v1648
        %v1665 = vtanh.pop %v1649
        %v1666 = vtanh.pop %v1650
        %v1667 = vtanh.pop %v1651
        %v1668 = vtanh.pop %v1652
        %v1669 = vtanh.pop %v1653
        %v1670 = vtanh.pop %v1654
        %v1671 = vtanh.pop %v1655
        %v1672 = vtanh.pop %v1656
        %v1673 = vtanh.pop %v1657
        %v1674 = vsub.f32 1.0, %v1565
        %v1675 = vsub.f32 1.0, %v1567
        %v1676 = vsub.f32 1.0, %v1569
        %v1677 = vsub.f32 1.0, %v1571
        %v1678 = vsub.f32 1.0, %v1573
        %v1679 = vsub.f32 1.0, %v1575
        %v1680 = vsub.f32 1.0, %v1577
        %v1681 = vsub.f32 1.0, %v1579
        %v1682 = vsub.f32 1.0, %v1581
        %v1683 = vsub.f32 1.0, %v1583
        %v1684 = vsub.f32 1.0, %v1585
        %v1685 = vsub.f32 1.0, %v1587
        %v1686 = vsub.f32 1.0, %v1589
        %v1687 = vsub.f32 1.0, %v1591
        %v1688 = vsub.f32 1.0, %v1593
        %v1689 = vsub.f32 1.0, %v1595
        %v1690 = vmul.f32 %v1674, %v1658
        %v1691 = vmul.f32 %v1675, %v1659
        %v1692 = vmul.f32 %v1676, %v1660
        %v1693 = vmul.f32 %v1677, %v1661
        %v1694 = vmul.f32 %v1678, %v1662
        %v1695 = vmul.f32 %v1679, %v1663
        %v1696 = vmul.f32 %v1680, %v1664
        %v1697 = vmul.f32 %v1681, %v1665
        %v1698 = vmul.f32 %v1682, %v1666
        %v1699 = vmul.f32 %v1683, %v1667
        %v1700 = vmul.f32 %v1684, %v1668
        %v1701 = vmul.f32 %v1685, %v1669
        %v1702 = vmul.f32 %v1686, %v1670
        %v1703 = vmul.f32 %v1687, %v1671
        %v1704 = vmul.f32 %v1688, %v1672
        %v1705 = vmul.f32 %v1689, %v1673
        %v1706 = vpack.c.bf16 %v1691, %v1690
        %v1707 = vpack.c.bf16 %v1693, %v1692
        %v1708 = vpack.c.bf16 %v1695, %v1694
        %v1709 = vpack.c.bf16 %v1697, %v1696
        %v1710 = vpack.c.bf16 %v1699, %v1698
        %v1711 = vpack.c.bf16 %v1701, %v1700
        %v1712 = vpack.c.bf16 %v1703, %v1702
        %v1713 = vpack.c.bf16 %v1705, %v1704
        %v1714 = vld [vmem:[#allocation5] sm:$0xff]
        %v1715 = vld [vmem:[#allocation5 + $0x8] sm:$0xf]
        %v1716 = vld [vmem:[#allocation5 + $0xc] sm:$0xff]
        %v1717 = vld [vmem:[#allocation5 + $0x14] sm:$0xf]
        %v1718 = vld [vmem:[#allocation5 + $0x18] sm:$0xff]
        %v1719 = vld [vmem:[#allocation5 + $0x20] sm:$0xf]
        %v1720 = vld [vmem:[#allocation5 + $0x24] sm:$0xff]
        %v1721 = vld [vmem:[#allocation5 + $0x2c] sm:$0xf]
        %v1722 = vld [vmem:[#allocation5 + $0x30] sm:$0xff]
        %v1723 = vld [vmem:[#allocation5 + $0x38] sm:$0xf]
        %v1724 = vld [vmem:[#allocation5 + $0x3c] sm:$0xff]
        %v1725 = vld [vmem:[#allocation5 + $0x44] sm:$0xf]
        %v1726 = vld [vmem:[#allocation5 + $0x48] sm:$0xff]
        %v1727 = vld [vmem:[#allocation5 + $0x50] sm:$0xf]
        %v1728 = vld [vmem:[#allocation5 + $0x54] sm:$0xff]
        %v1729 = vld [vmem:[#allocation5 + $0x5c] sm:$0xf]
        %v1730 = vld [vmem:[#allocation5 + $0x60] sm:$0xff]
        %v1731 = vld [vmem:[#allocation5 + $0x68] sm:$0xf]
        %v1732 = vld [vmem:[#allocation5 + $0x6c] sm:$0xff]
        %v1733 = vld [vmem:[#allocation5 + $0x74] sm:$0xf]
        %v1734 = vld [vmem:[#allocation5 + $0x78] sm:$0xff]
        %v1735 = vld [vmem:[#allocation5 + $0x80] sm:$0xf]
        %v1736 = vld [vmem:[#allocation5 + $0x84] sm:$0xff]
        %v1737 = vld [vmem:[#allocation5 + $0x8c] sm:$0xf]
        %v1738 = vld [vmem:[#allocation5 + $0x90] sm:$0xff]
        %v1739 = vld [vmem:[#allocation5 + $0x98] sm:$0xf]
        %v1740 = vld [vmem:[#allocation5 + $0x9c] sm:$0xff]
        %v1741 = vld [vmem:[#allocation5 + $0xa4] sm:$0xf]
        %v1742 = vld [vmem:[#allocation5 + $0xa8] sm:$0xff]
        %v1743 = vld [vmem:[#allocation5 + $0xb0] sm:$0xf]
        %v1744 = vld [vmem:[#allocation5 + $0xb4] sm:$0xff]
        %v1745 = vld [vmem:[#allocation5 + $0xbc] sm:$0xf]
        %v1778 = vunpack.c.l.b16 %v1714
        %v1779 = vunpack.c.h.b16 %v1714
        %v1780 = vunpack.c.l.b16 %v1715
        %v1781 = vunpack.c.l.b16 %v1716
        %v1782 = vunpack.c.h.b16 %v1716
        %v1783 = vunpack.c.l.b16 %v1717
        %v1784 = vunpack.c.l.b16 %v1718
        %v1785 = vunpack.c.h.b16 %v1718
        %v1786 = vunpack.c.l.b16 %v1719
        %v1787 = vunpack.c.l.b16 %v1720
        %v1788 = vunpack.c.h.b16 %v1720
        %v1789 = vunpack.c.l.b16 %v1721
        %v1790 = vunpack.c.l.b16 %v1722
        %v1791 = vunpack.c.h.b16 %v1722
        %v1792 = vunpack.c.l.b16 %v1723
        %v1793 = vunpack.c.l.b16 %v1724
        %v1794 = vunpack.c.h.b16 %v1724
        %v1795 = vunpack.c.l.b16 %v1725
        %v1796 = vunpack.c.l.b16 %v1726
        %v1797 = vunpack.c.h.b16 %v1726
        %v1798 = vunpack.c.l.b16 %v1727
        %v1799 = vunpack.c.l.b16 %v1728
        %v1800 = vunpack.c.h.b16 %v1728
        %v1801 = vunpack.c.l.b16 %v1729
        %v1802 = vunpack.c.l.b16 %v1730
        %v1803 = vunpack.c.h.b16 %v1730
        %v1804 = vunpack.c.l.b16 %v1731
        %v1805 = vunpack.c.l.b16 %v1732
        %v1806 = vunpack.c.h.b16 %v1732
        %v1807 = vunpack.c.l.b16 %v1733
        %v1808 = vunpack.c.l.b16 %v1734
        %v1809 = vunpack.c.h.b16 %v1734
        %v1810 = vunpack.c.l.b16 %v1735
        %v1811 = vunpack.c.l.b16 %v1736
        %v1812 = vunpack.c.h.b16 %v1736
        %v1813 = vunpack.c.l.b16 %v1737
        %v1814 = vunpack.c.l.b16 %v1738
        %v1815 = vunpack.c.h.b16 %v1738
        %v1816 = vunpack.c.l.b16 %v1739
        %v1817 = vunpack.c.l.b16 %v1740
        %v1818 = vunpack.c.h.b16 %v1740
        %v1819 = vunpack.c.l.b16 %v1741
        %v1820 = vunpack.c.l.b16 %v1742
        %v1821 = vunpack.c.h.b16 %v1742
        %v1822 = vunpack.c.l.b16 %v1743
        %v1823 = vunpack.c.l.b16 %v1744
        %v1824 = vunpack.c.h.b16 %v1744
        %v1825 = vunpack.c.l.b16 %v1745
        %v1826 = vpack.c.b16 %v1781, %v1778
        %v1827 = vpack.c.b16 %v1782, %v1779
        %v1828 = vpack.c.b16 %v1783, %v1780
        %v1829 = vpack.c.b16 %v1787, %v1784
        %v1830 = vpack.c.b16 %v1788, %v1785
        %v1831 = vpack.c.b16 %v1789, %v1786
        %v1832 = vpack.c.b16 %v1793, %v1790
        %v1833 = vpack.c.b16 %v1794, %v1791
        %v1834 = vpack.c.b16 %v1795, %v1792
        %v1835 = vpack.c.b16 %v1799, %v1796
        %v1836 = vpack.c.b16 %v1800, %v1797
        %v1837 = vpack.c.b16 %v1801, %v1798
        %v1838 = vpack.c.b16 %v1805, %v1802
        %v1839 = vpack.c.b16 %v1806, %v1803
        %v1840 = vpack.c.b16 %v1807, %v1804
        %v1841 = vpack.c.b16 %v1811, %v1808
        %v1842 = vpack.c.b16 %v1812, %v1809
        %v1843 = vpack.c.b16 %v1813, %v1810
        %v1844 = vpack.c.b16 %v1817, %v1814
        %v1845 = vpack.c.b16 %v1818, %v1815
        %v1846 = vpack.c.b16 %v1819, %v1816
        %v1847 = vpack.c.b16 %v1823, %v1820
        %v1848 = vpack.c.b16 %v1824, %v1821
        %v1849 = vpack.c.b16 %v1825, %v1822
        %1874 = vmatprep.subr.bf16.mxu0 %v1827
        %1875 = vmatpush1.bf16.msra.mxu0 %v1826
        %1876 = vmatprep.subr.bf16.mxu0 %v1830
        %1877 = vmatpush1.bf16.msra.mxu0 %v1829
        %1878 = vmatprep.subr.bf16.mxu0 %v1833
        %1879 = vmatpush1.bf16.msra.mxu0 %v1832
        %1880 = vmatprep.subr.bf16.mxu0 %v1836
        %1881 = vmatpush1.bf16.msra.mxu0 %v1835
        %1882 = vmatprep.subr.bf16.mxu0 %v1839
        %1883 = vmatpush1.bf16.msra.mxu0 %v1838
        %1884 = vmatprep.subr.bf16.mxu0 %v1842
        %1885 = vmatpush1.bf16.msra.mxu0 %v1841
        %1886 = vmatprep.subr.bf16.mxu0 %v1845
        %1887 = vmatpush1.bf16.msra.mxu0 %v1844
        %1888 = vmatprep.subr.bf16.mxu0 %v1848
        %1889 = vmatpush1.bf16.msra.mxu0 %v1847
        %1890 = vmatprep.subr.bf16.mxu0 0
        %1891 = vmatpush1.bf16.msra.mxu0 0
        %1892 = vmatprep.subr.bf16.mxu0 0
        %1893 = vmatpush1.bf16.msra.mxu0 0
        %1894 = vmatprep.subr.bf16.mxu0 0
        %1895 = vmatpush1.bf16.msra.mxu0 0
        %1896 = vmatprep.subr.bf16.mxu0 0
        %1897 = vmatpush1.bf16.msra.mxu0 0
        %1898 = vmatprep.subr.bf16.mxu0 0
        %1899 = vmatpush1.bf16.msra.mxu0 0
        %1900 = vmatprep.subr.bf16.mxu0 0
        %1901 = vmatpush1.bf16.msra.mxu0 0
        %1902 = vmatprep.subr.bf16.mxu0 0
        %1903 = vmatpush1.bf16.msra.mxu0 0
        %1904 = vmatprep.subr.bf16.mxu0 0
        %1905 = vmatpush1.bf16.msra.mxu0 0
        %1906 = vmatprep.mubr.bf16.mxu0 0
        %1907 = vmatmul.mubr.bf16.gmra.mrb[0].mxu0 %v1706
        %v1908 = vpop.f32.mrb[0].mxu0
        %v1909 = vadd.f32 0.0, %v1908
        %v1910 = vpop.f32.mrb[0].mxu0
        %v1911 = vadd.f32 0.0, %v1910
        %v1912 = vpop.f32.mrb[0].mxu0
        %v1913 = vadd.f32 0.0, %v1912
        %v1914 = vpop.f32.mrb[0].mxu0
        %v1915 = vadd.f32 0.0, %v1914
        %1916 = vmatprep.mubr.bf16.mxu0 0
        %1917 = vmatmul.mubr.bf16.gmra.mrb[0].mxu0 %v1707
        %v1918 = vpop.f32.mrb[0].mxu0
        %v1919 = vadd.f32 0.0, %v1918
        %v1920 = vpop.f32.mrb[0].mxu0
        %v1921 = vadd.f32 0.0, %v1920
        %v1922 = vpop.f32.mrb[0].mxu0
        %v1923 = vadd.f32 0.0, %v1922
        %v1924 = vpop.f32.mrb[0].mxu0
        %v1925 = vadd.f32 0.0, %v1924
        %1926 = vmatprep.mubr.bf16.mxu0 0
        %1927 = vmatmul.mubr.bf16.gmra.mrb[0].mxu0 %v1708
        %v1928 = vpop.f32.mrb[0].mxu0
        %v1929 = vadd.f32 0.0, %v1928
        %v1930 = vpop.f32.mrb[0].mxu0
        %v1931 = vadd.f32 0.0, %v1930
        %v1932 = vpop.f32.mrb[0].mxu0
        %v1933 = vadd.f32 0.0, %v1932
        %v1934 = vpop.f32.mrb[0].mxu0
        %v1935 = vadd.f32 0.0, %v1934
        %1936 = vmatprep.mubr.bf16.mxu0 0
        %1937 = vmatmul.mubr.bf16.gmra.mrb[0].mxu0 %v1709
        %v1938 = vpop.f32.mrb[0].mxu0
        %v1939 = vadd.f32 0.0, %v1938
        %v1940 = vpop.f32.mrb[0].mxu0
        %v1941 = vadd.f32 0.0, %v1940
        %v1942 = vpop.f32.mrb[0].mxu0
        %v1943 = vadd.f32 0.0, %v1942
        %v1944 = vpop.f32.mrb[0].mxu0
        %v1945 = vadd.f32 0.0, %v1944
        %1946 = vmatprep.mubr.bf16.mxu0 0
        %1947 = vmatmul.mubr.bf16.gmra.mrb[0].mxu0 %v1710
        %v1948 = vpop.f32.mrb[0].mxu0
        %v1949 = vadd.f32 0.0, %v1948
        %v1950 = vpop.f32.mrb[0].mxu0
        %v1951 = vadd.f32 0.0, %v1950
        %v1952 = vpop.f32.mrb[0].mxu0
        %v1953 = vadd.f32 0.0, %v1952
        %v1954 = vpop.f32.mrb[0].mxu0
        %v1955 = vadd.f32 0.0, %v1954
        %1956 = vmatprep.mubr.bf16.mxu0 0
        %1957 = vmatmul.mubr.bf16.gmra.mrb[0].mxu0 %v1711
        %v1958 = vpop.f32.mrb[0].mxu0
        %v1959 = vadd.f32 0.0, %v1958
        %v1960 = vpop.f32.mrb[0].mxu0
        %v1961 = vadd.f32 0.0, %v1960
        %v1962 = vpop.f32.mrb[0].mxu0
        %v1963 = vadd.f32 0.0, %v1962
        %v1964 = vpop.f32.mrb[0].mxu0
        %v1965 = vadd.f32 0.0, %v1964
        %1966 = vmatprep.mubr.bf16.mxu0 0
        %1967 = vmatmul.mubr.bf16.gmra.mrb[0].mxu0 %v1712
        %v1968 = vpop.f32.mrb[0].mxu0
        %v1969 = vadd.f32 0.0, %v1968
        %v1970 = vpop.f32.mrb[0].mxu0
        %v1971 = vadd.f32 0.0, %v1970
        %v1972 = vpop.f32.mrb[0].mxu0
        %v1973 = vadd.f32 0.0, %v1972
        %v1974 = vpop.f32.mrb[0].mxu0
        %v1975 = vadd.f32 0.0, %v1974
        %1976 = vmatprep.mubr.bf16.mxu0 0
        %1977 = vmatmul.mubr.bf16.gmra.mrb[0].mxu0 %v1713
        %v1978 = vpop.f32.mrb[0].mxu0
        %v1979 = vadd.f32 0.0, %v1978
        %v1980 = vpop.f32.mrb[0].mxu0
        %v1981 = vadd.f32 0.0, %v1980
        %v1982 = vpop.f32.mrb[0].mxu0
        %v1983 = vadd.f32 0.0, %v1982
        %v1984 = vpop.f32.mrb[0].mxu0
        %v1985 = vadd.f32 0.0, %v1984
        %1986 = vdwg.mxu0
        %1987 = vmatprep.subr.bf16.mxu0 0
        %1988 = vmatpush1.bf16.msra.mxu0 %v1828
        %1989 = vmatprep.subr.bf16.mxu0 0
        %1990 = vmatpush1.bf16.msra.mxu0 %v1831
        %1991 = vmatprep.subr.bf16.mxu0 0
        %1992 = vmatpush1.bf16.msra.mxu0 %v1834
        %1993 = vmatprep.subr.bf16.mxu0 0
        %1994 = vmatpush1.bf16.msra.mxu0 %v1837
        %1995 = vmatprep.subr.bf16.mxu0 0
        %1996 = vmatpush1.bf16.msra.mxu0 %v1840
        %1997 = vmatprep.subr.bf16.mxu0 0
        %1998 = vmatpush1.bf16.msra.mxu0 %v1843
        %1999 = vmatprep.subr.bf16.mxu0 0
        %2000 = vmatpush1.bf16.msra.mxu0 %v1846
        %2001 = vmatprep.subr.bf16.mxu0 0
        %2002 = vmatpush1.bf16.msra.mxu0 %v1849
        %2003 = vmatprep.subr.bf16.mxu0 0
        %2004 = vmatpush1.bf16.msra.mxu0 0
        %2005 = vmatprep.subr.bf16.mxu0 0
        %2006 = vmatpush1.bf16.msra.mxu0 0
        %2007 = vmatprep.subr.bf16.mxu0 0
        %2008 = vmatpush1.bf16.msra.mxu0 0
        %2009 = vmatprep.subr.bf16.mxu0 0
        %2010 = vmatpush1.bf16.msra.mxu0 0
        %2011 = vmatprep.subr.bf16.mxu0 0
        %2012 = vmatpush1.bf16.msra.mxu0 0
        %2013 = vmatprep.subr.bf16.mxu0 0
        %2014 = vmatpush1.bf16.msra.mxu0 0
        %2015 = vmatprep.subr.bf16.mxu0 0
        %2016 = vmatpush1.bf16.msra.mxu0 0
        %2017 = vmatprep.subr.bf16.mxu0 0
        %2018 = vmatpush1.bf16.msra.mxu0 0
        %2019 = vmatprep.mubr.bf16.mxu0 0
        %2020 = vmatmul.mubr.bf16.gmra.mrb[0].mxu0 %v1706
        %v2021 = vpop.f32.mrb[0].mxu0
        %v2022 = vadd.f32 0.0, %v2021
        %v2023 = vpop.f32.mrb[0].mxu0
        %v2024 = vpop.f32.mrb[0].mxu0
        %v2025 = vadd.f32 0.0, %v2024
        %v2026 = vpop.f32.mrb[0].mxu0
        %2027 = vmatprep.mubr.bf16.mxu0 0
        %2028 = vmatmul.mubr.bf16.gmra.mrb[0].mxu0 %v1707
        %v2029 = vpop.f32.mrb[0].mxu0
        %v2030 = vadd.f32 0.0, %v2029
        %v2031 = vpop.f32.mrb[0].mxu0
        %v2032 = vpop.f32.mrb[0].mxu0
        %v2033 = vadd.f32 0.0, %v2032
        %v2034 = vpop.f32.mrb[0].mxu0
        %2035 = vmatprep.mubr.bf16.mxu0 0
        %2036 = vmatmul.mubr.bf16.gmra.mrb[0].mxu0 %v1708
        %v2037 = vpop.f32.mrb[0].mxu0
        %v2038 = vadd.f32 0.0, %v2037
        %v2039 = vpop.f32.mrb[0].mxu0
        %v2040 = vpop.f32.mrb[0].mxu0
        %v2041 = vadd.f32 0.0, %v2040
        %v2042 = vpop.f32.mrb[0].mxu0
        %2043 = vmatprep.mubr.bf16.mxu0 0
        %2044 = vmatmul.mubr.bf16.gmra.mrb[0].mxu0 %v1709
        %v2045 = vpop.f32.mrb[0].mxu0
        %v2046 = vadd.f32 0.0, %v2045
        %v2047 = vpop.f32.mrb[0].mxu0
        %v2048 = vpop.f32.mrb[0].mxu0
        %v2049 = vadd.f32 0.0, %v2048
        %v2050 = vpop.f32.mrb[0].mxu0
        %2051 = vmatprep.mubr.bf16.mxu0 0
        %2052 = vmatmul.mubr.bf16.gmra.mrb[0].mxu0 %v1710
        %v2053 = vpop.f32.mrb[0].mxu0
        %v2054 = vadd.f32 0.0, %v2053
        %v2055 = vpop.f32.mrb[0].mxu0
        %v2056 = vpop.f32.mrb[0].mxu0
        %v2057 = vadd.f32 0.0, %v2056
        %v2058 = vpop.f32.mrb[0].mxu0
        %2059 = vmatprep.mubr.bf16.mxu0 0
        %2060 = vmatmul.mubr.bf16.gmra.mrb[0].mxu0 %v1711
        %v2061 = vpop.f32.mrb[0].mxu0
        %v2062 = vadd.f32 0.0, %v2061
        %v2063 = vpop.f32.mrb[0].mxu0
        %v2064 = vpop.f32.mrb[0].mxu0
        %v2065 = vadd.f32 0.0, %v2064
        %v2066 = vpop.f32.mrb[0].mxu0
        %2067 = vmatprep.mubr.bf16.mxu0 0
        %2068 = vmatmul.mubr.bf16.gmra.mrb[0].mxu0 %v1712
        %v2069 = vpop.f32.mrb[0].mxu0
        %v2070 = vadd.f32 0.0, %v2069
        %v2071 = vpop.f32.mrb[0].mxu0
        %v2072 = vpop.f32.mrb[0].mxu0
        %v2073 = vadd.f32 0.0, %v2072
        %v2074 = vpop.f32.mrb[0].mxu0
        %2075 = vmatprep.mubr.bf16.mxu0 0
        %2076 = vmatmul.mubr.bf16.gmra.mrb[0].mxu0 %v1713
        %v2077 = vpop.f32.mrb[0].mxu0
        %v2078 = vadd.f32 0.0, %v2077
        %v2079 = vpop.f32.mrb[0].mxu0
        %v2080 = vpop.f32.mrb[0].mxu0
        %v2081 = vadd.f32 0.0, %v2080
        %v2082 = vpop.f32.mrb[0].mxu0
        %2083 = vdwg.mxu0
        %v2084 = vld [vmem:[%s6 + $0xa] sm:$0x1]
        %v2086 = vlaneseq
        %v2087 = vshrl.u32 %v2086, 7
        %v2088 = vsub.s32 0, %v2087
        %v2089 = vrot.slane %v2084, %v2088
        %v2091 = vadd.f32 %v1909, %v2089
        %v2092 = vadd.f32 %v1913, %v2089
        %v2093 = vadd.f32 %v1919, %v2089
        %v2094 = vadd.f32 %v1923, %v2089
        %v2095 = vadd.f32 %v1929, %v2089
        %v2096 = vadd.f32 %v1933, %v2089
        %v2097 = vadd.f32 %v1939, %v2089
        %v2098 = vadd.f32 %v1943, %v2089
        %v2099 = vadd.f32 %v1949, %v2089
        %v2100 = vadd.f32 %v1953, %v2089
        %v2101 = vadd.f32 %v1959, %v2089
        %v2102 = vadd.f32 %v1963, %v2089
        %v2103 = vadd.f32 %v1969, %v2089
        %v2104 = vadd.f32 %v1973, %v2089
        %v2105 = vadd.f32 %v1979, %v2089
        %v2106 = vadd.f32 %v1983, %v2089
        %v2107 = vxor.u32 %v2091, 2147483648
        %v2108 = vxor.u32 %v2092, 2147483648
        %v2109 = vxor.u32 %v2093, 2147483648
        %v2110 = vxor.u32 %v2094, 2147483648
        %v2111 = vxor.u32 %v2095, 2147483648
        %v2112 = vxor.u32 %v2096, 2147483648
        %v2113 = vxor.u32 %v2097, 2147483648
        %v2114 = vxor.u32 %v2098, 2147483648
        %v2115 = vxor.u32 %v2099, 2147483648
        %v2116 = vxor.u32 %v2100, 2147483648
        %v2117 = vxor.u32 %v2101, 2147483648
        %v2118 = vxor.u32 %v2102, 2147483648
        %v2119 = vxor.u32 %v2103, 2147483648
        %v2120 = vxor.u32 %v2104, 2147483648
        %v2121 = vxor.u32 %v2105, 2147483648
        %v2122 = vxor.u32 %v2106, 2147483648
        %v2123 = vmul.f32 %v2107, 1.442695
        %v2124 = vpow.pop %v2123
        %v2125 = vmul.f32 %v2108, 1.442695
        %v2126 = vpow.pop %v2125
        %v2127 = vmul.f32 %v2109, 1.442695
        %v2128 = vpow.pop %v2127
        %v2129 = vmul.f32 %v2110, 1.442695
        %v2130 = vpow.pop %v2129
        %v2131 = vmul.f32 %v2111, 1.442695
        %v2132 = vpow.pop %v2131
        %v2133 = vmul.f32 %v2112, 1.442695
        %v2134 = vpow.pop %v2133
        %v2135 = vmul.f32 %v2113, 1.442695
        %v2136 = vpow.pop %v2135
        %v2137 = vmul.f32 %v2114, 1.442695
        %v2138 = vpow.pop %v2137
        %v2139 = vmul.f32 %v2115, 1.442695
        %v2140 = vpow.pop %v2139
        %v2141 = vmul.f32 %v2116, 1.442695
        %v2142 = vpow.pop %v2141
        %v2143 = vmul.f32 %v2117, 1.442695
        %v2144 = vpow.pop %v2143
        %v2145 = vmul.f32 %v2118, 1.442695
        %v2146 = vpow.pop %v2145
        %v2147 = vmul.f32 %v2119, 1.442695
        %v2148 = vpow.pop %v2147
        %v2149 = vmul.f32 %v2120, 1.442695
        %v2150 = vpow.pop %v2149
        %v2151 = vmul.f32 %v2121, 1.442695
        %v2152 = vpow.pop %v2151
        %v2153 = vmul.f32 %v2122, 1.442695
        %v2154 = vpow.pop %v2153
        %v2155 = vadd.f32 %v2124, 1.0
        %v2156 = vadd.f32 %v2126, 1.0
        %v2157 = vadd.f32 %v2128, 1.0
        %v2158 = vadd.f32 %v2130, 1.0
        %v2159 = vadd.f32 %v2132, 1.0
        %v2160 = vadd.f32 %v2134, 1.0
        %v2161 = vadd.f32 %v2136, 1.0
        %v2162 = vadd.f32 %v2138, 1.0
        %v2163 = vadd.f32 %v2140, 1.0
        %v2164 = vadd.f32 %v2142, 1.0
        %v2165 = vadd.f32 %v2144, 1.0
        %v2166 = vadd.f32 %v2146, 1.0
        %v2167 = vadd.f32 %v2148, 1.0
        %v2168 = vadd.f32 %v2150, 1.0
        %v2169 = vadd.f32 %v2152, 1.0
        %v2170 = vadd.f32 %v2154, 1.0
        %v2171 = vrcp.pop %v2155
        %v2172 = vmul.f32 1.0, %v2171
        %v2173 = vrcp.pop %v2156
        %v2174 = vmul.f32 1.0, %v2173
        %v2175 = vrcp.pop %v2157
        %v2176 = vmul.f32 1.0, %v2175
        %v2177 = vrcp.pop %v2158
        %v2178 = vmul.f32 1.0, %v2177
        %v2179 = vrcp.pop %v2159
        %v2180 = vmul.f32 1.0, %v2179
        %v2181 = vrcp.pop %v2160
        %v2182 = vmul.f32 1.0, %v2181
        %v2183 = vrcp.pop %v2161
        %v2184 = vmul.f32 1.0, %v2183
        %v2185 = vrcp.pop %v2162
        %v2186 = vmul.f32 1.0, %v2185
        %v2187 = vrcp.pop %v2163
        %v2188 = vmul.f32 1.0, %v2187
        %v2189 = vrcp.pop %v2164
        %v2190 = vmul.f32 1.0, %v2189
        %v2191 = vrcp.pop %v2165
        %v2192 = vmul.f32 1.0, %v2191
        %v2193 = vrcp.pop %v2166
        %v2194 = vmul.f32 1.0, %v2193
        %v2195 = vrcp.pop %v2167
        %v2196 = vmul.f32 1.0, %v2195
        %v2197 = vrcp.pop %v2168
        %v2198 = vmul.f32 1.0, %v2197
        %v2199 = vrcp.pop %v2169
        %v2200 = vmul.f32 1.0, %v2199
        %v2201 = vrcp.pop %v2170
        %v2202 = vmul.f32 1.0, %v2201
        %v2203 = vld [vmem:[%s6 + $0xb] sm:$0x1]
        %v2205 = vlaneseq
        %v2206 = vshrl.u32 %v2205, 7
        %v2207 = vsub.s32 0, %v2206
        %v2208 = vrot.slane %v2203, %v2207
        %v2210 = vadd.f32 %v1911, %v2208
        %v2211 = vadd.f32 %v1915, %v2208
        %v2212 = vadd.f32 %v1921, %v2208
        %v2213 = vadd.f32 %v1925, %v2208
        %v2214 = vadd.f32 %v1931, %v2208
        %v2215 = vadd.f32 %v1935, %v2208
        %v2216 = vadd.f32 %v1941, %v2208
        %v2217 = vadd.f32 %v1945, %v2208
        %v2218 = vadd.f32 %v1951, %v2208
        %v2219 = vadd.f32 %v1955, %v2208
        %v2220 = vadd.f32 %v1961, %v2208
        %v2221 = vadd.f32 %v1965, %v2208
        %v2222 = vadd.f32 %v1971, %v2208
        %v2223 = vadd.f32 %v1975, %v2208
        %v2224 = vadd.f32 %v1981, %v2208
        %v2225 = vadd.f32 %v1985, %v2208
        %v2226 = vxor.u32 %v2210, 2147483648
        %v2227 = vxor.u32 %v2211, 2147483648
        %v2228 = vxor.u32 %v2212, 2147483648
        %v2229 = vxor.u32 %v2213, 2147483648
        %v2230 = vxor.u32 %v2214, 2147483648
        %v2231 = vxor.u32 %v2215, 2147483648
        %v2232 = vxor.u32 %v2216, 2147483648
        %v2233 = vxor.u32 %v2217, 2147483648
        %v2234 = vxor.u32 %v2218, 2147483648
        %v2235 = vxor.u32 %v2219, 2147483648
        %v2236 = vxor.u32 %v2220, 2147483648
        %v2237 = vxor.u32 %v2221, 2147483648
        %v2238 = vxor.u32 %v2222, 2147483648
        %v2239 = vxor.u32 %v2223, 2147483648
        %v2240 = vxor.u32 %v2224, 2147483648
        %v2241 = vxor.u32 %v2225, 2147483648
        %v2242 = vmul.f32 %v2226, 1.442695
        %v2243 = vpow.pop %v2242
        %v2244 = vmul.f32 %v2227, 1.442695
        %v2245 = vpow.pop %v2244
        %v2246 = vmul.f32 %v2228, 1.442695
        %v2247 = vpow.pop %v2246
        %v2248 = vmul.f32 %v2229, 1.442695
        %v2249 = vpow.pop %v2248
        %v2250 = vmul.f32 %v2230, 1.442695
        %v2251 = vpow.pop %v2250
        %v2252 = vmul.f32 %v2231, 1.442695
        %v2253 = vpow.pop %v2252
        %v2254 = vmul.f32 %v2232, 1.442695
        %v2255 = vpow.pop %v2254
        %v2256 = vmul.f32 %v2233, 1.442695
        %v2257 = vpow.pop %v2256
        %v2258 = vmul.f32 %v2234, 1.442695
        %v2259 = vpow.pop %v2258
        %v2260 = vmul.f32 %v2235, 1.442695
        %v2261 = vpow.pop %v2260
        %v2262 = vmul.f32 %v2236, 1.442695
        %v2263 = vpow.pop %v2262
        %v2264 = vmul.f32 %v2237, 1.442695
        %v2265 = vpow.pop %v2264
        %v2266 = vmul.f32 %v2238, 1.442695
        %v2267 = vpow.pop %v2266
        %v2268 = vmul.f32 %v2239, 1.442695
        %v2269 = vpow.pop %v2268
        %v2270 = vmul.f32 %v2240, 1.442695
        %v2271 = vpow.pop %v2270
        %v2272 = vmul.f32 %v2241, 1.442695
        %v2273 = vpow.pop %v2272
        %v2274 = vadd.f32 %v2243, 1.0
        %v2275 = vadd.f32 %v2245, 1.0
        %v2276 = vadd.f32 %v2247, 1.0
        %v2277 = vadd.f32 %v2249, 1.0
        %v2278 = vadd.f32 %v2251, 1.0
        %v2279 = vadd.f32 %v2253, 1.0
        %v2280 = vadd.f32 %v2255, 1.0
        %v2281 = vadd.f32 %v2257, 1.0
        %v2282 = vadd.f32 %v2259, 1.0
        %v2283 = vadd.f32 %v2261, 1.0
        %v2284 = vadd.f32 %v2263, 1.0
        %v2285 = vadd.f32 %v2265, 1.0
        %v2286 = vadd.f32 %v2267, 1.0
        %v2287 = vadd.f32 %v2269, 1.0
        %v2288 = vadd.f32 %v2271, 1.0
        %v2289 = vadd.f32 %v2273, 1.0
        %v2290 = vrcp.pop %v2274
        %v2291 = vmul.f32 1.0, %v2290
        %v2292 = vrcp.pop %v2275
        %v2293 = vmul.f32 1.0, %v2292
        %v2294 = vrcp.pop %v2276
        %v2295 = vmul.f32 1.0, %v2294
        %v2296 = vrcp.pop %v2277
        %v2297 = vmul.f32 1.0, %v2296
        %v2298 = vrcp.pop %v2278
        %v2299 = vmul.f32 1.0, %v2298
        %v2300 = vrcp.pop %v2279
        %v2301 = vmul.f32 1.0, %v2300
        %v2302 = vrcp.pop %v2280
        %v2303 = vmul.f32 1.0, %v2302
        %v2304 = vrcp.pop %v2281
        %v2305 = vmul.f32 1.0, %v2304
        %v2306 = vrcp.pop %v2282
        %v2307 = vmul.f32 1.0, %v2306
        %v2308 = vrcp.pop %v2283
        %v2309 = vmul.f32 1.0, %v2308
        %v2310 = vrcp.pop %v2284
        %v2311 = vmul.f32 1.0, %v2310
        %v2312 = vrcp.pop %v2285
        %v2313 = vmul.f32 1.0, %v2312
        %v2314 = vrcp.pop %v2286
        %v2315 = vmul.f32 1.0, %v2314
        %v2316 = vrcp.pop %v2287
        %v2317 = vmul.f32 1.0, %v2316
        %v2318 = vrcp.pop %v2288
        %v2319 = vmul.f32 1.0, %v2318
        %v2320 = vrcp.pop %v2289
        %v2321 = vmul.f32 1.0, %v2320
        %v2322 = vld [vmem:[%s6 + $0xc] sm:$0x1]
        %v2324 = vlaneseq
        %v2325 = vshrl.u32 %v2324, 7
        %v2326 = vsub.s32 0, %v2325
        %v2327 = vrot.slane %v2322, %v2326
        %v2329 = vadd.f32 %v2022, %v2327
        %v2330 = vadd.f32 %v2025, %v2327
        %v2331 = vadd.f32 %v2030, %v2327
        %v2332 = vadd.f32 %v2033, %v2327
        %v2333 = vadd.f32 %v2038, %v2327
        %v2334 = vadd.f32 %v2041, %v2327
        %v2335 = vadd.f32 %v2046, %v2327
        %v2336 = vadd.f32 %v2049, %v2327
        %v2337 = vadd.f32 %v2054, %v2327
        %v2338 = vadd.f32 %v2057, %v2327
        %v2339 = vadd.f32 %v2062, %v2327
        %v2340 = vadd.f32 %v2065, %v2327
        %v2341 = vadd.f32 %v2070, %v2327
        %v2342 = vadd.f32 %v2073, %v2327
        %v2343 = vadd.f32 %v2078, %v2327
        %v2344 = vadd.f32 %v2081, %v2327
        %v2345 = vld [vmem:[%s6 + $0xd] sm:$0x1]
        %v2347 = vlaneseq
        %v2348 = vshrl.u32 %v2347, 7
        %v2349 = vsub.s32 0, %v2348
        %v2350 = vrot.slane %v2345, %v2349
        %v2352 = vmul.f32 %v2172, %v2350
        %v2353 = vmul.f32 %v2174, %v2350
        %v2354 = vmul.f32 %v2176, %v2350
        %v2355 = vmul.f32 %v2178, %v2350
        %v2356 = vmul.f32 %v2180, %v2350
        %v2357 = vmul.f32 %v2182, %v2350
        %v2358 = vmul.f32 %v2184, %v2350
        %v2359 = vmul.f32 %v2186, %v2350
        %v2360 = vmul.f32 %v2188, %v2350
        %v2361 = vmul.f32 %v2190, %v2350
        %v2362 = vmul.f32 %v2192, %v2350
        %v2363 = vmul.f32 %v2194, %v2350
        %v2364 = vmul.f32 %v2196, %v2350
        %v2365 = vmul.f32 %v2198, %v2350
        %v2366 = vmul.f32 %v2200, %v2350
        %v2367 = vmul.f32 %v2202, %v2350
        %v2368 = vadd.f32 %v2329, %v2352
        %v2369 = vadd.f32 %v2330, %v2353
        %v2370 = vadd.f32 %v2331, %v2354
        %v2371 = vadd.f32 %v2332, %v2355
        %v2372 = vadd.f32 %v2333, %v2356
        %v2373 = vadd.f32 %v2334, %v2357
        %v2374 = vadd.f32 %v2335, %v2358
        %v2375 = vadd.f32 %v2336, %v2359
        %v2376 = vadd.f32 %v2337, %v2360
        %v2377 = vadd.f32 %v2338, %v2361
        %v2378 = vadd.f32 %v2339, %v2362
        %v2379 = vadd.f32 %v2340, %v2363
        %v2380 = vadd.f32 %v2341, %v2364
        %v2381 = vadd.f32 %v2342, %v2365
        %v2382 = vadd.f32 %v2343, %v2366
        %v2383 = vadd.f32 %v2344, %v2367
        %v2384 = vtanh.pop %v2368
        %v2385 = vtanh.pop %v2369
        %v2386 = vtanh.pop %v2370
        %v2387 = vtanh.pop %v2371
        %v2388 = vtanh.pop %v2372
        %v2389 = vtanh.pop %v2373
        %v2390 = vtanh.pop %v2374
        %v2391 = vtanh.pop %v2375
        %v2392 = vtanh.pop %v2376
        %v2393 = vtanh.pop %v2377
        %v2394 = vtanh.pop %v2378
        %v2395 = vtanh.pop %v2379
        %v2396 = vtanh.pop %v2380
        %v2397 = vtanh.pop %v2381
        %v2398 = vtanh.pop %v2382
        %v2399 = vtanh.pop %v2383
        %v2400 = vsub.f32 1.0, %v2291
        %v2401 = vsub.f32 1.0, %v2293
        %v2402 = vsub.f32 1.0, %v2295
        %v2403 = vsub.f32 1.0, %v2297
        %v2404 = vsub.f32 1.0, %v2299
        %v2405 = vsub.f32 1.0, %v2301
        %v2406 = vsub.f32 1.0, %v2303
        %v2407 = vsub.f32 1.0, %v2305
        %v2408 = vsub.f32 1.0, %v2307
        %v2409 = vsub.f32 1.0, %v2309
        %v2410 = vsub.f32 1.0, %v2311
        %v2411 = vsub.f32 1.0, %v2313
        %v2412 = vsub.f32 1.0, %v2315
        %v2413 = vsub.f32 1.0, %v2317
        %v2414 = vsub.f32 1.0, %v2319
        %v2415 = vsub.f32 1.0, %v2321
        %v2416 = vmul.f32 %v2400, %v2384
        %v2417 = vmul.f32 %v2401, %v2385
        %v2418 = vmul.f32 %v2402, %v2386
        %v2419 = vmul.f32 %v2403, %v2387
        %v2420 = vmul.f32 %v2404, %v2388
        %v2421 = vmul.f32 %v2405, %v2389
        %v2422 = vmul.f32 %v2406, %v2390
        %v2423 = vmul.f32 %v2407, %v2391
        %v2424 = vmul.f32 %v2408, %v2392
        %v2425 = vmul.f32 %v2409, %v2393
        %v2426 = vmul.f32 %v2410, %v2394
        %v2427 = vmul.f32 %v2411, %v2395
        %v2428 = vmul.f32 %v2412, %v2396
        %v2429 = vmul.f32 %v2413, %v2397
        %v2430 = vmul.f32 %v2414, %v2398
        %v2431 = vmul.f32 %v2415, %v2399
        %v2432 = vpack.c.bf16 %v2417, %v2416
        %v2433 = vpack.c.bf16 %v2419, %v2418
        %v2434 = vpack.c.bf16 %v2421, %v2420
        %v2435 = vpack.c.bf16 %v2423, %v2422
        %v2436 = vpack.c.bf16 %v2425, %v2424
        %v2437 = vpack.c.bf16 %v2427, %v2426
        %v2438 = vpack.c.bf16 %v2429, %v2428
        %v2439 = vpack.c.bf16 %v2431, %v2430
        %v2440 = vld [vmem:[#allocation7] sm:$0xf]
        %v2441 = vld [vmem:[#allocation7 + $0x4] sm:$0xf]
        %v2442 = vld [vmem:[#allocation7 + $0x8] sm:$0xf]
        %v2443 = vld [vmem:[#allocation7 + $0xc] sm:$0xf]
        %v2444 = vld [vmem:[#allocation7 + $0x10] sm:$0xf]
        %v2445 = vld [vmem:[#allocation7 + $0x14] sm:$0xf]
        %v2446 = vld [vmem:[#allocation7 + $0x18] sm:$0xf]
        %v2447 = vld [vmem:[#allocation7 + $0x1c] sm:$0xf]
        %v2448 = vld [vmem:[#allocation7 + $0x20] sm:$0xf]
        %v2449 = vld [vmem:[#allocation7 + $0x24] sm:$0xf]
        %v2450 = vld [vmem:[#allocation7 + $0x28] sm:$0xf]
        %v2451 = vld [vmem:[#allocation7 + $0x2c] sm:$0xf]
        %v2452 = vld [vmem:[#allocation7 + $0x30] sm:$0xf]
        %v2453 = vld [vmem:[#allocation7 + $0x34] sm:$0xf]
        %v2454 = vld [vmem:[#allocation7 + $0x38] sm:$0xf]
        %v2455 = vld [vmem:[#allocation7 + $0x3c] sm:$0xf]
        %v2457 = vlaneseq
        %v2458 = vshrl.u32 %v2457, 7
        %v2459 = vsub.s32 0, %v2458
        %v2460 = vrot.slane %v329, %v2459
        %v2478 = vunpack.c.l.b16 %v2440
        %v2479 = vunpack.c.l.b16 %v2441
        %v2480 = vunpack.c.l.b16 %v2442
        %v2481 = vunpack.c.l.b16 %v2443
        %v2482 = vunpack.c.l.b16 %v2444
        %v2483 = vunpack.c.l.b16 %v2445
        %v2484 = vunpack.c.l.b16 %v2446
        %v2485 = vunpack.c.l.b16 %v2447
        %v2486 = vunpack.c.l.b16 %v2448
        %v2487 = vunpack.c.l.b16 %v2449
        %v2488 = vunpack.c.l.b16 %v2450
        %v2489 = vunpack.c.l.b16 %v2451
        %v2490 = vunpack.c.l.b16 %v2452
        %v2491 = vunpack.c.l.b16 %v2453
        %v2492 = vunpack.c.l.b16 %v2454
        %v2493 = vunpack.c.l.b16 %v2455
        %v2494 = vpack.c.b16 %v2479, %v2478
        %v2495 = vpack.c.b16 %v2481, %v2480
        %v2496 = vpack.c.b16 %v2483, %v2482
        %v2497 = vpack.c.b16 %v2485, %v2484
        %v2498 = vpack.c.b16 %v2487, %v2486
        %v2499 = vpack.c.b16 %v2489, %v2488
        %v2500 = vpack.c.b16 %v2491, %v2490
        %v2501 = vpack.c.b16 %v2493, %v2492
        %2510 = vmatprep.subr.bf16.mxu0 0
        %2511 = vmatpush1.bf16.msra.mxu0 %v2494
        %2512 = vmatprep.subr.bf16.mxu0 0
        %2513 = vmatpush1.bf16.msra.mxu0 %v2495
        %2514 = vmatprep.subr.bf16.mxu0 0
        %2515 = vmatpush1.bf16.msra.mxu0 %v2496
        %2516 = vmatprep.subr.bf16.mxu0 0
        %2517 = vmatpush1.bf16.msra.mxu0 %v2497
        %2518 = vmatprep.subr.bf16.mxu0 0
        %2519 = vmatpush1.bf16.msra.mxu0 %v2498
        %2520 = vmatprep.subr.bf16.mxu0 0
        %2521 = vmatpush1.bf16.msra.mxu0 %v2499
        %2522 = vmatprep.subr.bf16.mxu0 0
        %2523 = vmatpush1.bf16.msra.mxu0 %v2500
        %2524 = vmatprep.subr.bf16.mxu0 0
        %2525 = vmatpush1.bf16.msra.mxu0 %v2501
        %2526 = vmatprep.subr.bf16.mxu0 0
        %2527 = vmatpush1.bf16.msra.mxu0 0
        %2528 = vmatprep.subr.bf16.mxu0 0
        %2529 = vmatpush1.bf16.msra.mxu0 0
        %2530 = vmatprep.subr.bf16.mxu0 0
        %2531 = vmatpush1.bf16.msra.mxu0 0
        %2532 = vmatprep.subr.bf16.mxu0 0
        %2533 = vmatpush1.bf16.msra.mxu0 0
        %2534 = vmatprep.subr.bf16.mxu0 0
        %2535 = vmatpush1.bf16.msra.mxu0 0
        %2536 = vmatprep.subr.bf16.mxu0 0
        %2537 = vmatpush1.bf16.msra.mxu0 0
        %2538 = vmatprep.subr.bf16.mxu0 0
        %2539 = vmatpush1.bf16.msra.mxu0 0
        %2540 = vmatprep.subr.bf16.mxu0 0
        %2541 = vmatpush1.bf16.msra.mxu0 0
        %2542 = vmatprep.mubr.bf16.mxu0 0
        %2543 = vmatmul.mubr.bf16.gmra.mrb[0].mxu0 %v2432
        %v2544 = vpop.f32.mrb[0].mxu0
        %v2545 = vadd.f32 %v2460, %v2544
        %v2546 = vpop.f32.mrb[0].mxu0
        %v2547 = vpop.f32.mrb[0].mxu0
        %v2548 = vadd.f32 %v2460, %v2547
        %v2549 = vpop.f32.mrb[0].mxu0
        %2550 = vmatprep.mubr.bf16.mxu0 0
        %2551 = vmatmul.mubr.bf16.gmra.mrb[0].mxu0 %v2433
        %v2552 = vpop.f32.mrb[0].mxu0
        %v2553 = vadd.f32 %v2460, %v2552
        %v2554 = vpop.f32.mrb[0].mxu0
        %v2555 = vpop.f32.mrb[0].mxu0
        %v2556 = vadd.f32 %v2460, %v2555
        %v2557 = vpop.f32.mrb[0].mxu0
        %2558 = vmatprep.mubr.bf16.mxu0 0
        %2559 = vmatmul.mubr.bf16.gmra.mrb[0].mxu0 %v2434
        %v2560 = vpop.f32.mrb[0].mxu0
        %v2561 = vadd.f32 %v2460, %v2560
        %v2562 = vpop.f32.mrb[0].mxu0
        %v2563 = vpop.f32.mrb[0].mxu0
        %v2564 = vadd.f32 %v2460, %v2563
        %v2565 = vpop.f32.mrb[0].mxu0
        %2566 = vmatprep.mubr.bf16.mxu0 0
        %2567 = vmatmul.mubr.bf16.gmra.mrb[0].mxu0 %v2435
        %v2568 = vpop.f32.mrb[0].mxu0
        %v2569 = vadd.f32 %v2460, %v2568
        %v2570 = vpop.f32.mrb[0].mxu0
        %v2571 = vpop.f32.mrb[0].mxu0
        %v2572 = vadd.f32 %v2460, %v2571
        %v2573 = vpop.f32.mrb[0].mxu0
        %2574 = vmatprep.mubr.bf16.mxu0 0
        %2575 = vmatmul.mubr.bf16.gmra.mrb[0].mxu0 %v2436
        %v2576 = vpop.f32.mrb[0].mxu0
        %v2577 = vadd.f32 %v2460, %v2576
        %v2578 = vpop.f32.mrb[0].mxu0
        %v2579 = vpop.f32.mrb[0].mxu0
        %v2580 = vadd.f32 %v2460, %v2579
        %v2581 = vpop.f32.mrb[0].mxu0
        %2582 = vmatprep.mubr.bf16.mxu0 0
        %2583 = vmatmul.mubr.bf16.gmra.mrb[0].mxu0 %v2437
        %v2584 = vpop.f32.mrb[0].mxu0
        %v2585 = vadd.f32 %v2460, %v2584
        %v2586 = vpop.f32.mrb[0].mxu0
        %v2587 = vpop.f32.mrb[0].mxu0
        %v2588 = vadd.f32 %v2460, %v2587
        %v2589 = vpop.f32.mrb[0].mxu0
        %2590 = vmatprep.mubr.bf16.mxu0 0
        %2591 = vmatmul.mubr.bf16.gmra.mrb[0].mxu0 %v2438
        %v2592 = vpop.f32.mrb[0].mxu0
        %v2593 = vadd.f32 %v2460, %v2592
        %v2594 = vpop.f32.mrb[0].mxu0
        %v2595 = vpop.f32.mrb[0].mxu0
        %v2596 = vadd.f32 %v2460, %v2595
        %v2597 = vpop.f32.mrb[0].mxu0
        %2598 = vmatprep.mubr.bf16.mxu0 0
        %2599 = vmatmul.mubr.bf16.gmra.mrb[0].mxu0 %v2439
        %v2600 = vpop.f32.mrb[0].mxu0
        %v2601 = vadd.f32 %v2460, %v2600
        %v2602 = vpop.f32.mrb[0].mxu0
        %v2603 = vpop.f32.mrb[0].mxu0
        %v2604 = vadd.f32 %v2460, %v2603
        %v2605 = vpop.f32.mrb[0].mxu0
        %2606 = vdwg.mxu0
        %2607 = vst [vmem:[%s316] sm:$0xff] %v2545
        %2608 = vst [vmem:[%s316 + $0x8] sm:$0xff] %v2548
        %2609 = vst [vmem:[%s316 + $0x10] sm:$0xff] %v2553
        %2610 = vst [vmem:[%s316 + $0x18] sm:$0xff] %v2556
        %2611 = vst [vmem:[%s316 + $0x20] sm:$0xff] %v2561
        %2612 = vst [vmem:[%s316 + $0x28] sm:$0xff] %v2564
        %2613 = vst [vmem:[%s316 + $0x30] sm:$0xff] %v2569
        %2614 = vst [vmem:[%s316 + $0x38] sm:$0xff] %v2572
        %2615 = vst [vmem:[%s316 + $0x40] sm:$0xff] %v2577
        %2616 = vst [vmem:[%s316 + $0x48] sm:$0xff] %v2580
        %2617 = vst [vmem:[%s316 + $0x50] sm:$0xff] %v2585
        %2618 = vst [vmem:[%s316 + $0x58] sm:$0xff] %v2588
        %2619 = vst [vmem:[%s316 + $0x60] sm:$0xff] %v2593
        %2620 = vst [vmem:[%s316 + $0x68] sm:$0xff] %v2596
        %2621 = vst [vmem:[%s316 + $0x70] sm:$0xff] %v2601
        %2622 = vst [vmem:[%s316 + $0x78] sm:$0xff] %v2604
        %s2623 = sand.u32 %s183, 1
        %s2624 = scalar_lea.sflag [#allocation4], %s2623
        %s2625 = sand.u32 %s183, 1
        %s2626 = smul.addr %s2625, 128
        %s2627 = scalar_lea.vmem [#allocation8], %s2626
        // Predicated region
        $region61: #{tpu_custom_call.1} parent=47 // pred_check
          %p2628 = pneg %p193
        $region62: #{tpu_custom_call.1} parent=47 // pred_check_branch
          %2630 = sbr.rel (%p2628) target = $region64
        $region63: #{tpu_custom_call.1} parent=47 // pred_region
          %s2631 = smul.u32 16, %s23
          %s2633 = ssub.s32 2048, 2048
          %2634 = vsyncadd %s2624, %s2633
          %s2635 = smul.addr %s2631, 128
          %s2636 = scalar_lea.hbm %s7, %s2635
          %s2637 = sshll.u32 %s2627, 4
          %s2638 = int_to_ptr.vmem [resolvable:$true] %s2637
          %2643 = dma.vmem_to_hbm [thread:$0]  %s2638, 2048, %s2636, %s2624, 128, 128, 8
        $region64: #{tpu_custom_call.1} parent=47 // pred_fallthru
          _
      $region48: #{tpu_custom_call.1} parent=5 // pred_fallthru
        _
      %p2644 = scmp.le.s32.totalorder 2, %s18
      // Predicated region
      $region65: #{tpu_custom_call.1} parent=5 // pred_check
        %p2645 = pneg %p2644
      $region66: #{tpu_custom_call.1} parent=5 // pred_check_branch
        %2647 = sbr.rel (%p2645) target = $region68
      $region67: #{tpu_custom_call.1} parent=5 // pred_region
        %s2648 = ssub.s32 %s18, 2
        // Predicated region
        $region69: #{tpu_custom_call.1} parent=67 // pred_check
          %p2649 = pneg %p199
        $region70: #{tpu_custom_call.1} parent=67 // pred_check_branch
          %2651 = sbr.rel (%p2649) target = $region72
        $region71: #{tpu_custom_call.1} parent=67 // pred_region
          %s2652 = sand.u32 %s184, 1
          %s2653 = scalar_lea.sflag [#allocation4], %s2652
          %s2654 = sand.u32 %s184, 1
          %s2655 = smul.addr %s2654, 128
          %s2656 = scalar_lea.vmem [#allocation8], %s2655
          %2657 = dma.done %s2653, 2048
        $region72: #{tpu_custom_call.1} parent=67 // pred_fallthru
          _
      $region68: #{tpu_custom_call.1} parent=5 // pred_fallthru
        _
    $region6: #{tpu_custom_call.1} parent=1 // loop_footer
      %s22 = sadd.s32 1, %s18
    $region7: #{tpu_custom_call.1} parent=1 // loop_footer_branch
      %17 = sbr.rel target = $region3
    $region8: #{tpu_custom_call.1} parent=1 // loop_exit
      _
    %2658 = vsyncpa [#allocation3], 1
    %s2659 = scalar_lea.sflag [#allocation3], 1
    %2660 = vsyncpa %s2659, 1
    %2661 = vsyncpa [#allocation6], 1
    %2662 = vsyncpa [#allocation4], 1
    %s2663 = scalar_lea.sflag [#allocation4], 1
    %2664 = vsyncpa %s2663, 1

</llo_original>
